<compile_context>
chip_gen: v7x
topology: tpu7x:2x2x1
jax: 0.10.0
libtpu: 0.0.40
codegen_flags: <defaults>
</compile_context>

<pallas_src>
import functools

import jax
import jax.numpy as jnp
from jax.experimental import pallas as pl
from jax.experimental.pallas import tpu as pltpu


# ----------------------------- fused Pallas kernel ---------------------------

def _cnn1d_kernel(x_ref, w1ea_ref, w1eb_ref, w1oa_ref, w1ob_ref, s1_ref, t1_ref,
                  w2_ref, s2_ref, t2_ref, w3_ref, s3_ref, t3_ref,
                  w4_ref, s4_ref, t4_ref, o_ref, *, R, Lc2, Lp2, Lc3, Lc4):
    """Whole CNN1d forward for one batch element, entirely in VMEM/vregs.

    x_ref:   (1, R+1, 50)  input samples grouped into rows of 50
    w1*_ref: (50, 80)      banded conv1 weights: A @ w1ea + B @ w1eb gives the
                           even (pre-pool) conv1 outputs of 5 interleaved
                           phases; the *o* variants give the odd ones.
    w2_ref:  (720, 64)     conv2 weights, rows ordered (k, cin)
    w3_ref:  (192, 128)    conv3 weights, rows ordered (k, cin)
    w4_ref:  (384, Cout)   conv4 weights, rows ordered (k, cin)
    s*/t*:   (1, C)        folded BatchNorm scale / (conv-bias + BN) shift
    o_ref:   (1, Lc4, Cout)
    """
    f32 = jnp.float32
    bf16 = jnp.bfloat16

    # ---- stage 1: Conv1d(1,16,50,5) + BN + ReLU + MaxPool(2), fused --------
    xg = x_ref[0]                                  # (R+1, 50) f32
    a = xg[0:R, :].astype(bf16)                    # samples 50r .. 50r+49
    b = xg[1:R + 1, :].astype(bf16)                # samples 50r+50 .. 50r+99
    s1 = s1_ref[...]
    t1 = t1_ref[...]
    ze = (jnp.dot(a, w1ea_ref[...], preferred_element_type=f32) +
          jnp.dot(b, w1eb_ref[...], preferred_element_type=f32))
    zo = (jnp.dot(a, w1oa_ref[...], preferred_element_type=f32) +
          jnp.dot(b, w1ob_ref[...], preferred_element_type=f32))
    ze = jnp.maximum(ze * s1 + t1, 0.0)            # even pre-pool positions
    zo = jnp.maximum(zo * s1 + t1, 0.0)            # odd  pre-pool positions
    # pooled stage-1 output, phase-grouped: p1[r, 16*s + c] = pool1[5*r + s, c]
    p1 = jnp.maximum(ze, zo)                       # (R, 80) f32

    # ---- stage 2: Conv1d(16,64,45,5) + BN + ReLU ----------------------------
    # conv = sum over 9 row-shifted (Lc2, 80) @ (80, 64) matmuls (K=45 taps,
    # 5 taps per grouped row).
    acc2 = jnp.dot(p1[0:Lc2, :].astype(bf16), w2_ref[0:80, :],
                   preferred_element_type=f32)
    for j in range(1, 9):
        acc2 = acc2 + jnp.dot(p1[j:j + Lc2, :].astype(bf16),
                              w2_ref[80 * j:80 * (j + 1), :],
                              preferred_element_type=f32)
    h2 = jnp.maximum(acc2 * s2_ref[...] + t2_ref[...], 0.0)   # (Lc2, 64)

    # ---- MaxPool1d(2) on stage-2 output (row pairs, floor mode) -------------
    p2_rows = [jnp.maximum(h2[2 * m:2 * m + 1, :], h2[2 * m + 1:2 * m + 2, :])
               for m in range(Lp2)]                            # Lp2 x (1, 64)

    # ---- stage 3: Conv1d(64,128,3,1) + BN + ReLU ----------------------------
    s3 = s3_ref[...]
    t3 = t3_ref[...]
    h3_rows = []
    for l in range(Lc3):
        acc = jnp.dot(p2_rows[l].astype(bf16), w3_ref[0:64, :],
                      preferred_element_type=f32)
        for k in range(1, 3):
            acc = acc + jnp.dot(p2_rows[l + k].astype(bf16),
                                w3_ref[64 * k:64 * (k + 1), :],
                                preferred_element_type=f32)
        h3_rows.append(jnp.maximum(acc * s3 + t3, 0.0))        # (1, 128)

    # ---- stage 4: Conv1d(128,Cout,3,1) + BN + ReLU --------------------------
    s4 = s4_ref[...]
    t4 = t4_ref[...]
    for l in range(Lc4):
        acc = jnp.dot(h3_rows[l].astype(bf16), w4_ref[0:128, :],
                      preferred_element_type=f32)
        for k in range(1, 3):
            acc = acc + jnp.dot(h3_rows[l + k].astype(bf16),
                                w4_ref[128 * k:128 * (k + 1), :],
                                preferred_element_type=f32)
        o_ref[0, l:l + 1, :] = jnp.maximum(acc * s4 + t4, 0.0)  # (1, Cout)


# ------------------------------ weight preparation ---------------------------

def _fold_bn(bias, bn, eps=1e-5):
    gamma, beta, mean, var = bn
    scale = gamma * jax.lax.rsqrt(var + eps)
    shift = (bias - mean) * scale + beta
    return scale.astype(jnp.float32), shift.astype(jnp.float32)


def _stage1_weights(w1, odd):
    """Banded (100, 80) conv1 weight for the 5 interleaved pooled phases.

    Column block s (width 16) holds the conv1 taps shifted so that row q of
    the 100-sample window x[50r : 50r+100] multiplies w1[:, 0, q - off] with
    off = 10*s (+5 for the odd MaxPool branch).  Returned split into the
    first / second 50 rows so the kernel can use two (50, 80) matmuls.
    """
    wk = jnp.transpose(w1[:, 0, :])                    # (50, 16): rows=k
    full = jnp.zeros((100, 80), jnp.float32)
    for s in range(5):
        off = 10 * s + (5 if odd else 0)
        full = full.at[off:off + 50, 16 * s:16 * (s + 1)].set(wk)
    return full[:50].astype(jnp.bfloat16), full[50:].astype(jnp.bfloat16)


# --------------------------------- forward -----------------------------------

def cnn1d_forward(params, x, output_size):
    """x: (N, 1, L) float32 -> (N, 1, output_size) (last conv length == 1)."""
    (w1, b1, bn1), (w2, b2, bn2), (w3, b3, bn3), (w4, b4, bn4) = params
    N, cin, L = x.shape
    assert cin == 1

    # Static shape bookkeeping along the conv chain.
    Lc1 = (L - 50) // 5 + 1          # conv1 output length
    Lp1 = Lc1 // 2                   # after MaxPool1d(2)
    assert L % 50 == 0 and Lp1 % 5 == 0, "fused kernel needs L grouped by 50"
    R = Lp1 // 5                     # pooled stage-1 rows (5 positions/row)
    assert 50 * (R + 1) <= L
    Lc2 = R - 8                      # conv2 output length = (Lp1-45)//5 + 1
    Lp2 = Lc2 // 2                   # after MaxPool1d(2)
    Lc3 = Lp2 - 2                    # conv3 output length
    Lc4 = Lc3 - 2                    # conv4 output length
    assert Lc2 >= 2 and Lp2 >= 3 and Lc4 >= 1
    # TODO(synk): the final .view(-1, 1, output_size) is only layout-identical
    # to PyTorch when the last conv length is 1 (true for L=1000).
    assert Lc4 == 1

    # Fold conv bias + BatchNorm (eval mode) into per-channel scale/shift.
    s1, t1 = _fold_bn(b1, bn1)
    s2, t2 = _fold_bn(b2, bn2)
    s3, t3 = _fold_bn(b3, bn3)
    s4, t4 = _fold_bn(b4, bn4)

    bf16 = jnp.bfloat16
    w1ea, w1eb = _stage1_weights(w1, odd=False)
    w1oa, w1ob = _stage1_weights(w1, odd=True)
    w2m = w2.transpose(2, 1, 0).reshape(45 * 16, 64).astype(bf16)   # rows (k,cin)
    w3m = w3.transpose(2, 1, 0).reshape(3 * 64, 128).astype(bf16)
    w4m = w4.transpose(2, 1, 0).reshape(3 * 128, output_size).astype(bf16)
    s1t = jnp.tile(s1, 5).reshape(1, 80)     # phase-grouped stage-1 channels
    t1t = jnp.tile(t1, 5).reshape(1, 80)
    s2 = s2.reshape(1, 64)
    t2 = t2.reshape(1, 64)
    s3 = s3.reshape(1, 128)
    t3 = t3.reshape(1, 128)
    s4 = s4.reshape(1, output_size)
    t4 = t4.reshape(1, output_size)

    xg = x.reshape(N, L // 50, 50)           # contiguous view, no data movement

    kernel = functools.partial(_cnn1d_kernel, R=R, Lc2=Lc2, Lp2=Lp2,
                               Lc3=Lc3, Lc4=Lc4)

    def full2d(arr):
        return pl.BlockSpec(arr.shape, lambda n: (0, 0))

    out = pl.pallas_call(
        kernel,
        grid=(N,),
        in_specs=[
            pl.BlockSpec((1, L // 50, 50), lambda n: (n, 0, 0)),
            full2d(w1ea), full2d(w1eb), full2d(w1oa), full2d(w1ob),
            full2d(s1t), full2d(t1t),
            full2d(w2m), full2d(s2), full2d(t2),
            full2d(w3m), full2d(s3), full2d(t3),
            full2d(w4m), full2d(s4), full2d(t4),
        ],
        out_specs=pl.BlockSpec((1, Lc4, output_size), lambda n: (n, 0, 0)),
        out_shape=jax.ShapeDtypeStruct((N, Lc4, output_size), jnp.float32),
        compiler_params=pltpu.CompilerParams(
            dimension_semantics=("parallel",)),   # keep both v7x TCs busy
    )(xg, w1ea, w1eb, w1oa, w1ob, s1t, t1t, w2m, s2, t2, w3m, s3, t3,
      w4m, s4, t4)

    return out.reshape(-1, 1, output_size)


# ------------------------------ parameter init --------------------------------

def init_params(key, output_size):
    def conv_init(k, cout, cin, ksize):
        kw, kb = jax.random.split(k)
        bound = 1.0 / jnp.sqrt(cin * ksize)
        w = jax.random.uniform(kw, (cout, cin, ksize), jnp.float32, -bound, bound)
        b = jax.random.uniform(kb, (cout,), jnp.float32, -bound, bound)
        return w, b

    def bn_init(k, c):
        k1, k2, k3 = jax.random.split(k, 3)
        gamma = jax.random.uniform(k1, (c,), jnp.float32, 0.5, 1.5)
        beta = jax.random.uniform(k2, (c,), jnp.float32, -0.5, 0.5)
        mean = 0.1 * jax.random.normal(k3, (c,), jnp.float32)
        var = jnp.ones((c,), jnp.float32)
        return (gamma, beta, mean, var)

    ks = jax.random.split(key, 8)
    p1 = (*conv_init(ks[0], 16, 1, 50), bn_init(ks[1], 16))
    p2 = (*conv_init(ks[2], 64, 16, 45), bn_init(ks[3], 64))
    p3 = (*conv_init(ks[4], 128, 64, 3), bn_init(ks[5], 128))
    p4 = (*conv_init(ks[6], output_size, 128, 3), bn_init(ks[7], output_size))
    return (p1, p2, p3, p4)


# ----------------------------------- main --------------------------------------

if __name__ == "__main__":
    output_size = 8
    N, L = 2, 1000  # L=1000 -> 191 -> 95 -> 11 -> 5 -> 3 -> 1 along the chain

    key = jax.random.PRNGKey(0)
    k_params, k_x = jax.random.split(key)
    params = init_params(k_params, output_size)
    x = jax.random.normal(k_x, (N, 1, L), jnp.float32)

    fwd = jax.jit(lambda p, xx: cnn1d_forward(p, xx, output_size))
    out = fwd(params, x)
    jax.block_until_ready(out)
    assert out.shape == (N, 1, output_size), out.shape
    assert bool(jnp.all(jnp.isfinite(out)))
    print("KERNEL_OK")
</pallas_src>

<mosaic_0001>
module attributes {stable_mosaic.version = 11 : i64} {
  func.func @_cnn1d_kernel(%arg0: i32, %arg1: memref<1x20x50xf32, #tpu.memory_space<vmem>>, %arg2: memref<50x80xbf16, #tpu.memory_space<vmem>>, %arg3: memref<50x80xbf16, #tpu.memory_space<vmem>>, %arg4: memref<50x80xbf16, #tpu.memory_space<vmem>>, %arg5: memref<50x80xbf16, #tpu.memory_space<vmem>>, %arg6: memref<1x80xf32, #tpu.memory_space<vmem>>, %arg7: memref<1x80xf32, #tpu.memory_space<vmem>>, %arg8: memref<720x64xbf16, #tpu.memory_space<vmem>>, %arg9: memref<1x64xf32, #tpu.memory_space<vmem>>, %arg10: memref<1x64xf32, #tpu.memory_space<vmem>>, %arg11: memref<192x128xbf16, #tpu.memory_space<vmem>>, %arg12: memref<1x128xf32, #tpu.memory_space<vmem>>, %arg13: memref<1x128xf32, #tpu.memory_space<vmem>>, %arg14: memref<384x8xbf16, #tpu.memory_space<vmem>>, %arg15: memref<1x8xf32, #tpu.memory_space<vmem>>, %arg16: memref<1x8xf32, #tpu.memory_space<vmem>>, %arg17: memref<1x1x8xf32, #tpu.memory_space<vmem>>) attributes {dimension_semantics = [#tpu.dimension_semantics<parallel>], iteration_bounds = array<i64: 2>, scalar_prefetch = 0 : i64, scratch_operands = 0 : i64, tpu.core_type = #tpu.core_type<tc>, window_params = [{transform_indices = @transform_0, window_bounds = array<i64: 1, 20, 50>}, {pipeline_mode = #tpu.pipeline_mode<synchronous>, transform_indices = @transform_1, window_bounds = array<i64: 50, 80>}, {pipeline_mode = #tpu.pipeline_mode<synchronous>, transform_indices = @transform_2, window_bounds = array<i64: 50, 80>}, {pipeline_mode = #tpu.pipeline_mode<synchronous>, transform_indices = @transform_3, window_bounds = array<i64: 50, 80>}, {pipeline_mode = #tpu.pipeline_mode<synchronous>, transform_indices = @transform_4, window_bounds = array<i64: 50, 80>}, {pipeline_mode = #tpu.pipeline_mode<synchronous>, transform_indices = @transform_5, window_bounds = array<i64: 1, 80>}, {pipeline_mode = #tpu.pipeline_mode<synchronous>, transform_indices = @transform_6, window_bounds = array<i64: 1, 80>}, {pipeline_mode = #tpu.pipeline_mode<synchronous>, transform_indices = @transform_7, window_bounds = array<i64: 720, 64>}, {pipeline_mode = #tpu.pipeline_mode<synchronous>, transform_indices = @transform_8, window_bounds = array<i64: 1, 64>}, {pipeline_mode = #tpu.pipeline_mode<synchronous>, transform_indices = @transform_9, window_bounds = array<i64: 1, 64>}, {pipeline_mode = #tpu.pipeline_mode<synchronous>, transform_indices = @transform_10, window_bounds = array<i64: 192, 128>}, {pipeline_mode = #tpu.pipeline_mode<synchronous>, transform_indices = @transform_11, window_bounds = array<i64: 1, 128>}, {pipeline_mode = #tpu.pipeline_mode<synchronous>, transform_indices = @transform_12, window_bounds = array<i64: 1, 128>}, {pipeline_mode = #tpu.pipeline_mode<synchronous>, transform_indices = @transform_13, window_bounds = array<i64: 384, 8>}, {pipeline_mode = #tpu.pipeline_mode<synchronous>, transform_indices = @transform_14, window_bounds = array<i64: 1, 8>}, {pipeline_mode = #tpu.pipeline_mode<synchronous>, transform_indices = @transform_15, window_bounds = array<i64: 1, 8>}, {transform_indices = @transform_16, window_bounds = array<i64: 1, 1, 8>}]} {
    %c0 = arith.constant 0 : index
    %c0_0 = arith.constant 0 : index
    %c0_1 = arith.constant 0 : index
    %0 = vector.load %arg1[%c0, %c0_0, %c0_1] : memref<1x20x50xf32, #tpu.memory_space<vmem>>, vector<1x20x50xf32>
    %1 = vector.shape_cast %0 : vector<1x20x50xf32> to vector<20x50xf32>
    %2 = vector.extract_strided_slice %1 {offsets = [0, 0], sizes = [19, 50], strides = [1, 1]} : vector<20x50xf32> to vector<19x50xf32>
    %3 = arith.truncf %2 : vector<19x50xf32> to vector<19x50xbf16>
    %4 = vector.extract_strided_slice %1 {offsets = [1, 0], sizes = [19, 50], strides = [1, 1]} : vector<20x50xf32> to vector<19x50xf32>
    %5 = arith.truncf %4 : vector<19x50xf32> to vector<19x50xbf16>
    %c0_2 = arith.constant 0 : index
    %c0_3 = arith.constant 0 : index
    %6 = vector.load %arg6[%c0_2, %c0_3] : memref<1x80xf32, #tpu.memory_space<vmem>>, vector<1x80xf32>
    %c0_4 = arith.constant 0 : index
    %c0_5 = arith.constant 0 : index
    %7 = vector.load %arg7[%c0_4, %c0_5] : memref<1x80xf32, #tpu.memory_space<vmem>>, vector<1x80xf32>
    %c0_6 = arith.constant 0 : index
    %c0_7 = arith.constant 0 : index
    %8 = vector.load %arg2[%c0_6, %c0_7] : memref<50x80xbf16, #tpu.memory_space<vmem>>, vector<50x80xbf16>
    %cst = arith.constant dense<0.000000e+00> : vector<19x80xf32>
    %9 = tpu.matmul %3, %8, %cst {dimension_numbers = #tpu.dot_dimension_numbers<[1], [0], [0], [1], [0, 0, 1, 1], [], []>} : vector<19x50xbf16>, vector<50x80xbf16>, vector<19x80xf32> -> vector<19x80xf32>
    %c0_8 = arith.constant 0 : index
    %c0_9 = arith.constant 0 : index
    %10 = vector.load %arg3[%c0_8, %c0_9] : memref<50x80xbf16, #tpu.memory_space<vmem>>, vector<50x80xbf16>
    %cst_10 = arith.constant dense<0.000000e+00> : vector<19x80xf32>
    %11 = tpu.matmul %5, %10, %cst_10 {dimension_numbers = #tpu.dot_dimension_numbers<[1], [0], [0], [1], [0, 0, 1, 1], [], []>} : vector<19x50xbf16>, vector<50x80xbf16>, vector<19x80xf32> -> vector<19x80xf32>
    %12 = arith.addf %9, %11 : vector<19x80xf32>
    %c0_11 = arith.constant 0 : index
    %c0_12 = arith.constant 0 : index
    %13 = vector.load %arg4[%c0_11, %c0_12] : memref<50x80xbf16, #tpu.memory_space<vmem>>, vector<50x80xbf16>
    %cst_13 = arith.constant dense<0.000000e+00> : vector<19x80xf32>
    %14 = tpu.matmul %3, %13, %cst_13 {dimension_numbers = #tpu.dot_dimension_numbers<[1], [0], [0], [1], [0, 0, 1, 1], [], []>} : vector<19x50xbf16>, vector<50x80xbf16>, vector<19x80xf32> -> vector<19x80xf32>
    %c0_14 = arith.constant 0 : index
    %c0_15 = arith.constant 0 : index
    %15 = vector.load %arg5[%c0_14, %c0_15] : memref<50x80xbf16, #tpu.memory_space<vmem>>, vector<50x80xbf16>
    %cst_16 = arith.constant dense<0.000000e+00> : vector<19x80xf32>
    %16 = tpu.matmul %5, %15, %cst_16 {dimension_numbers = #tpu.dot_dimension_numbers<[1], [0], [0], [1], [0, 0, 1, 1], [], []>} : vector<19x50xbf16>, vector<50x80xbf16>, vector<19x80xf32> -> vector<19x80xf32>
    %17 = arith.addf %14, %16 : vector<19x80xf32>
    %18 = vector.broadcast %6 : vector<1x80xf32> to vector<19x80xf32>
    %19 = arith.mulf %12, %18 : vector<19x80xf32>
    %20 = vector.broadcast %7 : vector<1x80xf32> to vector<19x80xf32>
    %21 = arith.addf %19, %20 : vector<19x80xf32>
    %cst_17 = arith.constant 0.000000e+00 : f32
    %22 = vector.broadcast %cst_17 : f32 to vector<19x80xf32>
    %23 = arith.maximumf %21, %22 : vector<19x80xf32>
    %24 = vector.broadcast %6 : vector<1x80xf32> to vector<19x80xf32>
    %25 = arith.mulf %17, %24 : vector<19x80xf32>
    %26 = vector.broadcast %7 : vector<1x80xf32> to vector<19x80xf32>
    %27 = arith.addf %25, %26 : vector<19x80xf32>
    %cst_18 = arith.constant 0.000000e+00 : f32
    %28 = vector.broadcast %cst_18 : f32 to vector<19x80xf32>
    %29 = arith.maximumf %27, %28 : vector<19x80xf32>
    %30 = arith.maximumf %23, %29 : vector<19x80xf32>
    %31 = vector.extract_strided_slice %30 {offsets = [0, 0], sizes = [11, 80], strides = [1, 1]} : vector<19x80xf32> to vector<11x80xf32>
    %32 = arith.truncf %31 : vector<11x80xf32> to vector<11x80xbf16>
    %c0_19 = arith.constant 0 : index
    %c0_20 = arith.constant 0 : index
    %33 = vector.load %arg8[%c0_19, %c0_20] : memref<720x64xbf16, #tpu.memory_space<vmem>>, vector<80x64xbf16>
    %cst_21 = arith.constant dense<0.000000e+00> : vector<11x64xf32>
    %34 = tpu.matmul %32, %33, %cst_21 {dimension_numbers = #tpu.dot_dimension_numbers<[1], [0], [0], [1], [0, 0, 1, 1], [], []>} : vector<11x80xbf16>, vector<80x64xbf16>, vector<11x64xf32> -> vector<11x64xf32>
    %35 = vector.extract_strided_slice %30 {offsets = [1, 0], sizes = [11, 80], strides = [1, 1]} : vector<19x80xf32> to vector<11x80xf32>
    %36 = arith.truncf %35 : vector<11x80xf32> to vector<11x80xbf16>
    %c80 = arith.constant 80 : index
    %c0_22 = arith.constant 0 : index
    %37 = vector.load %arg8[%c80, %c0_22] : memref<720x64xbf16, #tpu.memory_space<vmem>>, vector<80x64xbf16>
    %cst_23 = arith.constant dense<0.000000e+00> : vector<11x64xf32>
    %38 = tpu.matmul %36, %37, %cst_23 {dimension_numbers = #tpu.dot_dimension_numbers<[1], [0], [0], [1], [0, 0, 1, 1], [], []>} : vector<11x80xbf16>, vector<80x64xbf16>, vector<11x64xf32> -> vector<11x64xf32>
    %39 = arith.addf %34, %38 : vector<11x64xf32>
    %40 = vector.extract_strided_slice %30 {offsets = [2, 0], sizes = [11, 80], strides = [1, 1]} : vector<19x80xf32> to vector<11x80xf32>
    %41 = arith.truncf %40 : vector<11x80xf32> to vector<11x80xbf16>
    %c160 = arith.constant 160 : index
    %c0_24 = arith.constant 0 : index
    %42 = vector.load %arg8[%c160, %c0_24] : memref<720x64xbf16, #tpu.memory_space<vmem>>, vector<80x64xbf16>
    %cst_25 = arith.constant dense<0.000000e+00> : vector<11x64xf32>
    %43 = tpu.matmul %41, %42, %cst_25 {dimension_numbers = #tpu.dot_dimension_numbers<[1], [0], [0], [1], [0, 0, 1, 1], [], []>} : vector<11x80xbf16>, vector<80x64xbf16>, vector<11x64xf32> -> vector<11x64xf32>
    %44 = arith.addf %39, %43 : vector<11x64xf32>
    %45 = vector.extract_strided_slice %30 {offsets = [3, 0], sizes = [11, 80], strides = [1, 1]} : vector<19x80xf32> to vector<11x80xf32>
    %46 = arith.truncf %45 : vector<11x80xf32> to vector<11x80xbf16>
    %c240 = arith.constant 240 : index
    %c0_26 = arith.constant 0 : index
    %47 = vector.load %arg8[%c240, %c0_26] : memref<720x64xbf16, #tpu.memory_space<vmem>>, vector<80x64xbf16>
    %cst_27 = arith.constant dense<0.000000e+00> : vector<11x64xf32>
    %48 = tpu.matmul %46, %47, %cst_27 {dimension_numbers = #tpu.dot_dimension_numbers<[1], [0], [0], [1], [0, 0, 1, 1], [], []>} : vector<11x80xbf16>, vector<80x64xbf16>, vector<11x64xf32> -> vector<11x64xf32>
    %49 = arith.addf %44, %48 : vector<11x64xf32>
    %50 = vector.extract_strided_slice %30 {offsets = [4, 0], sizes = [11, 80], strides = [1, 1]} : vector<19x80xf32> to vector<11x80xf32>
    %51 = arith.truncf %50 : vector<11x80xf32> to vector<11x80xbf16>
    %c320 = arith.constant 320 : index
    %c0_28 = arith.constant 0 : index
    %52 = vector.load %arg8[%c320, %c0_28] : memref<720x64xbf16, #tpu.memory_space<vmem>>, vector<80x64xbf16>
    %cst_29 = arith.constant dense<0.000000e+00> : vector<11x64xf32>
    %53 = tpu.matmul %51, %52, %cst_29 {dimension_numbers = #tpu.dot_dimension_numbers<[1], [0], [0], [1], [0, 0, 1, 1], [], []>} : vector<11x80xbf16>, vector<80x64xbf16>, vector<11x64xf32> -> vector<11x64xf32>
    %54 = arith.addf %49, %53 : vector<11x64xf32>
    %55 = vector.extract_strided_slice %30 {offsets = [5, 0], sizes = [11, 80], strides = [1, 1]} : vector<19x80xf32> to vector<11x80xf32>
    %56 = arith.truncf %55 : vector<11x80xf32> to vector<11x80xbf16>
    %c400 = arith.constant 400 : index
    %c0_30 = arith.constant 0 : index
    %57 = vector.load %arg8[%c400, %c0_30] : memref<720x64xbf16, #tpu.memory_space<vmem>>, vector<80x64xbf16>
    %cst_31 = arith.constant dense<0.000000e+00> : vector<11x64xf32>
    %58 = tpu.matmul %56, %57, %cst_31 {dimension_numbers = #tpu.dot_dimension_numbers<[1], [0], [0], [1], [0, 0, 1, 1], [], []>} : vector<11x80xbf16>, vector<80x64xbf16>, vector<11x64xf32> -> vector<11x64xf32>
    %59 = arith.addf %54, %58 : vector<11x64xf32>
    %60 = vector.extract_strided_slice %30 {offsets = [6, 0], sizes = [11, 80], strides = [1, 1]} : vector<19x80xf32> to vector<11x80xf32>
    %61 = arith.truncf %60 : vector<11x80xf32> to vector<11x80xbf16>
    %c480 = arith.constant 480 : index
    %c0_32 = arith.constant 0 : index
    %62 = vector.load %arg8[%c480, %c0_32] : memref<720x64xbf16, #tpu.memory_space<vmem>>, vector<80x64xbf16>
    %cst_33 = arith.constant dense<0.000000e+00> : vector<11x64xf32>
    %63 = tpu.matmul %61, %62, %cst_33 {dimension_numbers = #tpu.dot_dimension_numbers<[1], [0], [0], [1], [0, 0, 1, 1], [], []>} : vector<11x80xbf16>, vector<80x64xbf16>, vector<11x64xf32> -> vector<11x64xf32>
    %64 = arith.addf %59, %63 : vector<11x64xf32>
    %65 = vector.extract_strided_slice %30 {offsets = [7, 0], sizes = [11, 80], strides = [1, 1]} : vector<19x80xf32> to vector<11x80xf32>
    %66 = arith.truncf %65 : vector<11x80xf32> to vector<11x80xbf16>
    %c560 = arith.constant 560 : index
    %c0_34 = arith.constant 0 : index
    %67 = vector.load %arg8[%c560, %c0_34] : memref<720x64xbf16, #tpu.memory_space<vmem>>, vector<80x64xbf16>
    %cst_35 = arith.constant dense<0.000000e+00> : vector<11x64xf32>
    %68 = tpu.matmul %66, %67, %cst_35 {dimension_numbers = #tpu.dot_dimension_numbers<[1], [0], [0], [1], [0, 0, 1, 1], [], []>} : vector<11x80xbf16>, vector<80x64xbf16>, vector<11x64xf32> -> vector<11x64xf32>
    %69 = arith.addf %64, %68 : vector<11x64xf32>
    %70 = vector.extract_strided_slice %30 {offsets = [8, 0], sizes = [11, 80], strides = [1, 1]} : vector<19x80xf32> to vector<11x80xf32>
    %71 = arith.truncf %70 : vector<11x80xf32> to vector<11x80xbf16>
    %c640 = arith.constant 640 : index
    %c0_36 = arith.constant 0 : index
    %72 = vector.load %arg8[%c640, %c0_36] : memref<720x64xbf16, #tpu.memory_space<vmem>>, vector<80x64xbf16>
    %cst_37 = arith.constant dense<0.000000e+00> : vector<11x64xf32>
    %73 = tpu.matmul %71, %72, %cst_37 {dimension_numbers = #tpu.dot_dimension_numbers<[1], [0], [0], [1], [0, 0, 1, 1], [], []>} : vector<11x80xbf16>, vector<80x64xbf16>, vector<11x64xf32> -> vector<11x64xf32>
    %74 = arith.addf %69, %73 : vector<11x64xf32>
    %c0_38 = arith.constant 0 : index
    %c0_39 = arith.constant 0 : index
    %75 = vector.load %arg9[%c0_38, %c0_39] : memref<1x64xf32, #tpu.memory_space<vmem>>, vector<1x64xf32>
    %76 = vector.broadcast %75 : vector<1x64xf32> to vector<11x64xf32>
    %77 = arith.mulf %74, %76 : vector<11x64xf32>
    %c0_40 = arith.constant 0 : index
    %c0_41 = arith.constant 0 : index
    %78 = vector.load %arg10[%c0_40, %c0_41] : memref<1x64xf32, #tpu.memory_space<vmem>>, vector<1x64xf32>
    %79 = vector.broadcast %78 : vector<1x64xf32> to vector<11x64xf32>
    %80 = arith.addf %77, %79 : vector<11x64xf32>
    %cst_42 = arith.constant 0.000000e+00 : f32
    %81 = vector.broadcast %cst_42 : f32 to vector<11x64xf32>
    %82 = arith.maximumf %80, %81 : vector<11x64xf32>
    %83 = vector.extract_strided_slice %82 {offsets = [0, 0], sizes = [1, 64], strides = [1, 1]} : vector<11x64xf32> to vector<1x64xf32>
    %84 = vector.extract_strided_slice %82 {offsets = [1, 0], sizes = [1, 64], strides = [1, 1]} : vector<11x64xf32> to vector<1x64xf32>
    %85 = arith.maximumf %83, %84 : vector<1x64xf32>
    %86 = vector.extract_strided_slice %82 {offsets = [2, 0], sizes = [1, 64], strides = [1, 1]} : vector<11x64xf32> to vector<1x64xf32>
    %87 = vector.extract_strided_slice %82 {offsets = [3, 0], sizes = [1, 64], strides = [1, 1]} : vector<11x64xf32> to vector<1x64xf32>
    %88 = arith.maximumf %86, %87 : vector<1x64xf32>
    %89 = vector.extract_strided_slice %82 {offsets = [4, 0], sizes = [1, 64], strides = [1, 1]} : vector<11x64xf32> to vector<1x64xf32>
    %90 = vector.extract_strided_slice %82 {offsets = [5, 0], sizes = [1, 64], strides = [1, 1]} : vector<11x64xf32> to vector<1x64xf32>
    %91 = arith.maximumf %89, %90 : vector<1x64xf32>
    %92 = vector.extract_strided_slice %82 {offsets = [6, 0], sizes = [1, 64], strides = [1, 1]} : vector<11x64xf32> to vector<1x64xf32>
    %93 = vector.extract_strided_slice %82 {offsets = [7, 0], sizes = [1, 64], strides = [1, 1]} : vector<11x64xf32> to vector<1x64xf32>
    %94 = arith.maximumf %92, %93 : vector<1x64xf32>
    %95 = vector.extract_strided_slice %82 {offsets = [8, 0], sizes = [1, 64], strides = [1, 1]} : vector<11x64xf32> to vector<1x64xf32>
    %96 = vector.extract_strided_slice %82 {offsets = [9, 0], sizes = [1, 64], strides = [1, 1]} : vector<11x64xf32> to vector<1x64xf32>
    %97 = arith.maximumf %95, %96 : vector<1x64xf32>
    %c0_43 = arith.constant 0 : index
    %c0_44 = arith.constant 0 : index
    %98 = vector.load %arg12[%c0_43, %c0_44] : memref<1x128xf32, #tpu.memory_space<vmem>>, vector<1x128xf32>
    %c0_45 = arith.constant 0 : index
    %c0_46 = arith.constant 0 : index
    %99 = vector.load %arg13[%c0_45, %c0_46] : memref<1x128xf32, #tpu.memory_space<vmem>>, vector<1x128xf32>
    %100 = arith.truncf %85 : vector<1x64xf32> to vector<1x64xbf16>
    %c0_47 = arith.constant 0 : index
    %c0_48 = arith.constant 0 : index
    %101 = vector.load %arg11[%c0_47, %c0_48] : memref<192x128xbf16, #tpu.memory_space<vmem>>, vector<64x128xbf16>
    %cst_49 = arith.constant dense<0.000000e+00> : vector<1x128xf32>
    %102 = tpu.matmul %100, %101, %cst_49 {dimension_numbers = #tpu.dot_dimension_numbers<[1], [0], [0], [1], [0, 0, 1, 1], [], []>} : vector<1x64xbf16>, vector<64x128xbf16>, vector<1x128xf32> -> vector<1x128xf32>
    %103 = arith.truncf %88 : vector<1x64xf32> to vector<1x64xbf16>
    %c64 = arith.constant 64 : index
    %c0_50 = arith.constant 0 : index
    %104 = vector.load %arg11[%c64, %c0_50] : memref<192x128xbf16, #tpu.memory_space<vmem>>, vector<64x128xbf16>
    %cst_51 = arith.constant dense<0.000000e+00> : vector<1x128xf32>
    %105 = tpu.matmul %103, %104, %cst_51 {dimension_numbers = #tpu.dot_dimension_numbers<[1], [0], [0], [1], [0, 0, 1, 1], [], []>} : vector<1x64xbf16>, vector<64x128xbf16>, vector<1x128xf32> -> vector<1x128xf32>
    %106 = arith.addf %102, %105 : vector<1x128xf32>
    %107 = arith.truncf %91 : vector<1x64xf32> to vector<1x64xbf16>
    %c128 = arith.constant 128 : index
    %c0_52 = arith.constant 0 : index
    %108 = vector.load %arg11[%c128, %c0_52] : memref<192x128xbf16, #tpu.memory_space<vmem>>, vector<64x128xbf16>
    %cst_53 = arith.constant dense<0.000000e+00> : vector<1x128xf32>
    %109 = tpu.matmul %107, %108, %cst_53 {dimension_numbers = #tpu.dot_dimension_numbers<[1], [0], [0], [1], [0, 0, 1, 1], [], []>} : vector<1x64xbf16>, vector<64x128xbf16>, vector<1x128xf32> -> vector<1x128xf32>
    %110 = arith.addf %106, %109 : vector<1x128xf32>
    %111 = arith.mulf %110, %98 : vector<1x128xf32>
    %112 = arith.addf %111, %99 : vector<1x128xf32>
    %cst_54 = arith.constant 0.000000e+00 : f32
    %113 = vector.broadcast %cst_54 : f32 to vector<1x128xf32>
    %114 = arith.maximumf %112, %113 : vector<1x128xf32>
    %115 = arith.truncf %88 : vector<1x64xf32> to vector<1x64xbf16>
    %c0_55 = arith.constant 0 : index
    %c0_56 = arith.constant 0 : index
    %116 = vector.load %arg11[%c0_55, %c0_56] : memref<192x128xbf16, #tpu.memory_space<vmem>>, vector<64x128xbf16>
    %cst_57 = arith.constant dense<0.000000e+00> : vector<1x128xf32>
    %117 = tpu.matmul %115, %116, %cst_57 {dimension_numbers = #tpu.dot_dimension_numbers<[1], [0], [0], [1], [0, 0, 1, 1], [], []>} : vector<1x64xbf16>, vector<64x128xbf16>, vector<1x128xf32> -> vector<1x128xf32>
    %118 = arith.truncf %91 : vector<1x64xf32> to vector<1x64xbf16>
    %c64_58 = arith.constant 64 : index
    %c0_59 = arith.constant 0 : index
    %119 = vector.load %arg11[%c64_58, %c0_59] : memref<192x128xbf16, #tpu.memory_space<vmem>>, vector<64x128xbf16>
    %cst_60 = arith.constant dense<0.000000e+00> : vector<1x128xf32>
    %120 = tpu.matmul %118, %119, %cst_60 {dimension_numbers = #tpu.dot_dimension_numbers<[1], [0], [0], [1], [0, 0, 1, 1], [], []>} : vector<1x64xbf16>, vector<64x128xbf16>, vector<1x128xf32> -> vector<1x128xf32>
    %121 = arith.addf %117, %120 : vector<1x128xf32>
    %122 = arith.truncf %94 : vector<1x64xf32> to vector<1x64xbf16>
    %c128_61 = arith.constant 128 : index
    %c0_62 = arith.constant 0 : index
    %123 = vector.load %arg11[%c128_61, %c0_62] : memref<192x128xbf16, #tpu.memory_space<vmem>>, vector<64x128xbf16>
    %cst_63 = arith.constant dense<0.000000e+00> : vector<1x128xf32>
    %124 = tpu.matmul %122, %123, %cst_63 {dimension_numbers = #tpu.dot_dimension_numbers<[1], [0], [0], [1], [0, 0, 1, 1], [], []>} : vector<1x64xbf16>, vector<64x128xbf16>, vector<1x128xf32> -> vector<1x128xf32>
    %125 = arith.addf %121, %124 : vector<1x128xf32>
    %126 = arith.mulf %125, %98 : vector<1x128xf32>
    %127 = arith.addf %126, %99 : vector<1x128xf32>
    %cst_64 = arith.constant 0.000000e+00 : f32
    %128 = vector.broadcast %cst_64 : f32 to vector<1x128xf32>
    %129 = arith.maximumf %127, %128 : vector<1x128xf32>
    %130 = arith.truncf %91 : vector<1x64xf32> to vector<1x64xbf16>
    %c0_65 = arith.constant 0 : index
    %c0_66 = arith.constant 0 : index
    %131 = vector.load %arg11[%c0_65, %c0_66] : memref<192x128xbf16, #tpu.memory_space<vmem>>, vector<64x128xbf16>
    %cst_67 = arith.constant dense<0.000000e+00> : vector<1x128xf32>
    %132 = tpu.matmul %130, %131, %cst_67 {dimension_numbers = #tpu.dot_dimension_numbers<[1], [0], [0], [1], [0, 0, 1, 1], [], []>} : vector<1x64xbf16>, vector<64x128xbf16>, vector<1x128xf32> -> vector<1x128xf32>
    %133 = arith.truncf %94 : vector<1x64xf32> to vector<1x64xbf16>
    %c64_68 = arith.constant 64 : index
    %c0_69 = arith.constant 0 : index
    %134 = vector.load %arg11[%c64_68, %c0_69] : memref<192x128xbf16, #tpu.memory_space<vmem>>, vector<64x128xbf16>
    %cst_70 = arith.constant dense<0.000000e+00> : vector<1x128xf32>
    %135 = tpu.matmul %133, %134, %cst_70 {dimension_numbers = #tpu.dot_dimension_numbers<[1], [0], [0], [1], [0, 0, 1, 1], [], []>} : vector<1x64xbf16>, vector<64x128xbf16>, vector<1x128xf32> -> vector<1x128xf32>
    %136 = arith.addf %132, %135 : vector<1x128xf32>
    %137 = arith.truncf %97 : vector<1x64xf32> to vector<1x64xbf16>
    %c128_71 = arith.constant 128 : index
    %c0_72 = arith.constant 0 : index
    %138 = vector.load %arg11[%c128_71, %c0_72] : memref<192x128xbf16, #tpu.memory_space<vmem>>, vector<64x128xbf16>
    %cst_73 = arith.constant dense<0.000000e+00> : vector<1x128xf32>
    %139 = tpu.matmul %137, %138, %cst_73 {dimension_numbers = #tpu.dot_dimension_numbers<[1], [0], [0], [1], [0, 0, 1, 1], [], []>} : vector<1x64xbf16>, vector<64x128xbf16>, vector<1x128xf32> -> vector<1x128xf32>
    %140 = arith.addf %136, %139 : vector<1x128xf32>
    %141 = arith.mulf %140, %98 : vector<1x128xf32>
    %142 = arith.addf %141, %99 : vector<1x128xf32>
    %cst_74 = arith.constant 0.000000e+00 : f32
    %143 = vector.broadcast %cst_74 : f32 to vector<1x128xf32>
    %144 = arith.maximumf %142, %143 : vector<1x128xf32>
    %c0_75 = arith.constant 0 : index
    %c0_76 = arith.constant 0 : index
    %145 = vector.load %arg15[%c0_75, %c0_76] : memref<1x8xf32, #tpu.memory_space<vmem>>, vector<1x8xf32>
    %c0_77 = arith.constant 0 : index
    %c0_78 = arith.constant 0 : index
    %146 = vector.load %arg16[%c0_77, %c0_78] : memref<1x8xf32, #tpu.memory_space<vmem>>, vector<1x8xf32>
    %147 = arith.truncf %114 : vector<1x128xf32> to vector<1x128xbf16>
    %c0_79 = arith.constant 0 : index
    %c0_80 = arith.constant 0 : index
    %148 = vector.load %arg14[%c0_79, %c0_80] : memref<384x8xbf16, #tpu.memory_space<vmem>>, vector<128x8xbf16>
    %cst_81 = arith.constant dense<0.000000e+00> : vector<1x8xf32>
    %149 = tpu.matmul %147, %148, %cst_81 {dimension_numbers = #tpu.dot_dimension_numbers<[1], [0], [0], [1], [0, 0, 1, 1], [], []>} : vector<1x128xbf16>, vector<128x8xbf16>, vector<1x8xf32> -> vector<1x8xf32>
    %150 = arith.truncf %129 : vector<1x128xf32> to vector<1x128xbf16>
    %c128_82 = arith.constant 128 : index
    %c0_83 = arith.constant 0 : index
    %151 = vector.load %arg14[%c128_82, %c0_83] : memref<384x8xbf16, #tpu.memory_space<vmem>>, vector<128x8xbf16>
    %cst_84 = arith.constant dense<0.000000e+00> : vector<1x8xf32>
    %152 = tpu.matmul %150, %151, %cst_84 {dimension_numbers = #tpu.dot_dimension_numbers<[1], [0], [0], [1], [0, 0, 1, 1], [], []>} : vector<1x128xbf16>, vector<128x8xbf16>, vector<1x8xf32> -> vector<1x8xf32>
    %153 = arith.addf %149, %152 : vector<1x8xf32>
    %154 = arith.truncf %144 : vector<1x128xf32> to vector<1x128xbf16>
    %c256 = arith.constant 256 : index
    %c0_85 = arith.constant 0 : index
    %155 = vector.load %arg14[%c256, %c0_85] : memref<384x8xbf16, #tpu.memory_space<vmem>>, vector<128x8xbf16>
    %cst_86 = arith.constant dense<0.000000e+00> : vector<1x8xf32>
    %156 = tpu.matmul %154, %155, %cst_86 {dimension_numbers = #tpu.dot_dimension_numbers<[1], [0], [0], [1], [0, 0, 1, 1], [], []>} : vector<1x128xbf16>, vector<128x8xbf16>, vector<1x8xf32> -> vector<1x8xf32>
    %157 = arith.addf %153, %156 : vector<1x8xf32>
    %158 = arith.mulf %157, %145 : vector<1x8xf32>
    %159 = arith.addf %158, %146 : vector<1x8xf32>
    %cst_87 = arith.constant 0.000000e+00 : f32
    %160 = vector.broadcast %cst_87 : f32 to vector<1x8xf32>
    %161 = arith.maximumf %159, %160 : vector<1x8xf32>
    %c0_88 = arith.constant 0 : index
    %c0_89 = arith.constant 0 : index
    %c0_90 = arith.constant 0 : index
    %162 = vector.load %arg17[%c0_88, %c0_89, %c0_90] : memref<1x1x8xf32, #tpu.memory_space<vmem>>, vector<1x1x8xf32>
    %163 = vector.shape_cast %162 : vector<1x1x8xf32> to vector<1x8xf32>
    %164 = vector.shape_cast %161 : vector<1x8xf32> to vector<1x1x8xf32>
    tpu.vector_store %arg17[%c0_88, %c0_89, %c0_90], %164 {strides = array<i32>} : memref<1x1x8xf32, #tpu.memory_space<vmem>>, vector<1x1x8xf32>,
    return
  }
  func.func @transform_0(%arg0: i32) -> (i32, i32, i32) {
    %c0_i32 = arith.constant 0 : i32
    %c0_i32_0 = arith.constant 0 : i32
    %c0_i32_1 = arith.constant 0 : i32
    return %arg0, %c0_i32, %c0_i32_0 : i32, i32, i32
  }
  func.func @transform_1(%arg0: i32) -> (i32, i32) {
    %c0_i32 = arith.constant 0 : i32
    %c0_i32_0 = arith.constant 0 : i32
    %c0_i32_1 = arith.constant 0 : i32
    return %c0_i32, %c0_i32_0 : i32, i32
  }
  func.func @transform_2(%arg0: i32) -> (i32, i32) {
    %c0_i32 = arith.constant 0 : i32
    %c0_i32_0 = arith.constant 0 : i32
    %c0_i32_1 = arith.constant 0 : i32
    return %c0_i32, %c0_i32_0 : i32, i32
  }
  func.func @transform_3(%arg0: i32) -> (i32, i32) {
    %c0_i32 = arith.constant 0 : i32
    %c0_i32_0 = arith.constant 0 : i32
    %c0_i32_1 = arith.constant 0 : i32
    return %c0_i32, %c0_i32_0 : i32, i32
  }
  func.func @transform_4(%arg0: i32) -> (i32, i32) {
    %c0_i32 = arith.constant 0 : i32
    %c0_i32_0 = arith.constant 0 : i32
    %c0_i32_1 = arith.constant 0 : i32
    return %c0_i32, %c0_i32_0 : i32, i32
  }
  func.func @transform_5(%arg0: i32) -> (i32, i32) {
    %c0_i32 = arith.constant 0 : i32
    %c0_i32_0 = arith.constant 0 : i32
    %c0_i32_1 = arith.constant 0 : i32
    return %c0_i32, %c0_i32_0 : i32, i32
  }
  func.func @transform_6(%arg0: i32) -> (i32, i32) {
    %c0_i32 = arith.constant 0 : i32
    %c0_i32_0 = arith.constant 0 : i32
    %c0_i32_1 = arith.constant 0 : i32
    return %c0_i32, %c0_i32_0 : i32, i32
  }
  func.func @transform_7(%arg0: i32) -> (i32, i32) {
    %c0_i32 = arith.constant 0 : i32
    %c0_i32_0 = arith.constant 0 : i32
    %c0_i32_1 = arith.constant 0 : i32
    return %c0_i32, %c0_i32_0 : i32, i32
  }
  func.func @transform_8(%arg0: i32) -> (i32, i32) {
    %c0_i32 = arith.constant 0 : i32
    %c0_i32_0 = arith.constant 0 : i32
    %c0_i32_1 = arith.constant 0 : i32
    return %c0_i32, %c0_i32_0 : i32, i32
  }
  func.func @transform_9(%arg0: i32) -> (i32, i32) {
    %c0_i32 = arith.constant 0 : i32
    %c0_i32_0 = arith.constant 0 : i32
    %c0_i32_1 = arith.constant 0 : i32
    return %c0_i32, %c0_i32_0 : i32, i32
  }
  func.func @transform_10(%arg0: i32) -> (i32, i32) {
    %c0_i32 = arith.constant 0 : i32
    %c0_i32_0 = arith.constant 0 : i32
    %c0_i32_1 = arith.constant 0 : i32
    return %c0_i32, %c0_i32_0 : i32, i32
  }
  func.func @transform_11(%arg0: i32) -> (i32, i32) {
    %c0_i32 = arith.constant 0 : i32
    %c0_i32_0 = arith.constant 0 : i32
    %c0_i32_1 = arith.constant 0 : i32
    return %c0_i32, %c0_i32_0 : i32, i32
  }
  func.func @transform_12(%arg0: i32) -> (i32, i32) {
    %c0_i32 = arith.constant 0 : i32
    %c0_i32_0 = arith.constant 0 : i32
    %c0_i32_1 = arith.constant 0 : i32
    return %c0_i32, %c0_i32_0 : i32, i32
  }
  func.func @transform_13(%arg0: i32) -> (i32, i32) {
    %c0_i32 = arith.constant 0 : i32
    %c0_i32_0 = arith.constant 0 : i32
    %c0_i32_1 = arith.constant 0 : i32
    return %c0_i32, %c0_i32_0 : i32, i32
  }
  func.func @transform_14(%arg0: i32) -> (i32, i32) {
    %c0_i32 = arith.constant 0 : i32
    %c0_i32_0 = arith.constant 0 : i32
    %c0_i32_1 = arith.constant 0 : i32
    return %c0_i32, %c0_i32_0 : i32, i32
  }
  func.func @transform_15(%arg0: i32) -> (i32, i32) {
    %c0_i32 = arith.constant 0 : i32
    %c0_i32_0 = arith.constant 0 : i32
    %c0_i32_1 = arith.constant 0 : i32
    return %c0_i32, %c0_i32_0 : i32, i32
  }
  func.func @transform_16(%arg0: i32) -> (i32, i32, i32) {
    %c0_i32 = arith.constant 0 : i32
    %c0_i32_0 = arith.constant 0 : i32
    %c0_i32_1 = arith.constant 0 : i32
    return %arg0, %c0_i32, %c0_i32_0 : i32, i32, i32
  }
}

</mosaic_0001>

<llo_original>
// kernel: tile.18
$region0: #{tile.18}
  #allocation0 [shape = 's32[1]{0}', space=sflag, size = 0x4, scoped, tag = 'scoped memory for tile.18']
  %s0 = inlined_call_operand.vmem [shape: f32[16], index: 0, kind: input, shape index: {}]
  %s1 = inlined_call_operand.vmem [shape: f32[5,16], index: 1, kind: output, shape index: {}]
  // Predicated region
  $region2: #{tile.18} parent=0 // pred_check
    _
  $region3: #{tile.18} parent=0 // pred_check_branch
    %3 = sbr.rel (0) target = $region5
  $region4: #{tile.18} parent=0 // pred_region
    _
  $region5: #{tile.18} parent=0 // pred_fallthru
    _
  %v4 = vld [vmem:[%s0] ss:$0 sm:$0xff]
  %5 = vst [vmem:[%s1] sm:$0xff] %v4

// kernel: tile.19
$region0: #{tile.19}
  %s0 = inlined_call_operand.vmem [shape: f32[5,16], index: 0, kind: input, shape index: {}]
  %s1 = inlined_call_operand.vmem [shape: f32[1,80], index: 1, kind: output, shape index: {}]
  $region1: #{tile.19} parent=0
    #allocation0 [shape = 'u8[4096]{0}', space=vmem, size = 0x1000, scoped, tag = 'scoped mem for output reshape']
    %v2 = vld [vmem:[%s0] sm:$0x1]
    %vm3 = vcmask 130048
    %4 = vst.msk [vmem:[#allocation0] sm:$0x1] %vm3, %v2
    %s5 = scalar_lea.vmem %s0, 4
    %v6 = vld [vmem:[%s5] sm:$0x1]
    %7 = vrot.lane.b32.xlu0 %v6, 64
    %v8 = vpop.permute.xlu0 %7
    %vm9 = vcmask 654848
    %10 = vst.msk [vmem:[#allocation0] sm:$0x1] %vm9, %v8
    %s11 = scalar_lea.vmem %s0, 3
    %v12 = vld [vmem:[%s11] sm:$0x1]
    %13 = vrot.lane.b32.xlu0 %v12, 48
    %v14 = vpop.permute.xlu0 %13
    %vm15 = vcmask 523648
    %16 = vst.msk [vmem:[#allocation0] sm:$0x1] %vm15, %v14
    %s17 = scalar_lea.vmem %s0, 2
    %v18 = vld [vmem:[%s17] sm:$0x1]
    %19 = vrot.lane.b32.xlu0 %v18, 32
    %v20 = vpop.permute.xlu0 %19
    %vm21 = vcmask 392448
    %22 = vst.msk [vmem:[#allocation0] sm:$0x1] %vm21, %v20
    %s23 = scalar_lea.vmem %s0, 1
    %v24 = vld [vmem:[%s23] sm:$0x1]
    %25 = vrot.lane.b32.xlu0 %v24, 16
    %v26 = vpop.permute.xlu0 %25
    %vm27 = vcmask 261248
    %28 = vst.msk [vmem:[#allocation0] sm:$0x1] %vm27, %v26
    %s30 = sshllo.u32 0, 1
    %v32 = vld [vmem:[#allocation0] sm:%s30]
    %s33 = sshllo.u32 0, 1
    %34 = vst [vmem:[%s1] sm:%s33] %v32

// kernel: _lambda_.1
$region0: #{_lambda_.1}
  #allocation0 [shape = 'u32[]', space=smem, size = 0x4, offset = 0x4, fixed_abs, tag = 'smem constant byte address 0x4 - core index']
  #allocation1 [shape = 'u32[144,128]{1,0:T(1,128)}', space=vmem, size = 0x12000, scoped, tag = 'internal scratch']
  %s0 = inlined_call_operand.vmem [shape: f32[2,20,50], index: 0, kind: input, shape index: {}]
  %s1 = inlined_call_operand.vmem [shape: bf16[50,80], index: 1, kind: input, shape index: {}]
  %s2 = inlined_call_operand.vmem [shape: bf16[50,80], index: 2, kind: input, shape index: {}]
  %s3 = inlined_call_operand.vmem [shape: bf16[50,80], index: 3, kind: input, shape index: {}]
  %s4 = inlined_call_operand.vmem [shape: bf16[50,80], index: 4, kind: input, shape index: {}]
  %s5 = inlined_call_operand.vmem [shape: f32[1,80], index: 5, kind: input, shape index: {}]
  %s6 = inlined_call_operand.vmem [shape: f32[1,80], index: 6, kind: input, shape index: {}]
  %s7 = inlined_call_operand.vmem [shape: bf16[720,64], index: 7, kind: input, shape index: {}]
  %s8 = inlined_call_operand.vmem [shape: f32[1,64], index: 8, kind: input, shape index: {}]
  %s9 = inlined_call_operand.vmem [shape: f32[1,64], index: 9, kind: input, shape index: {}]
  %s10 = inlined_call_operand.vmem [shape: bf16[192,128], index: 10, kind: input, shape index: {}]
  %s11 = inlined_call_operand.vmem [shape: f32[1,128], index: 11, kind: input, shape index: {}]
  %s12 = inlined_call_operand.vmem [shape: f32[1,128], index: 12, kind: input, shape index: {}]
  %s13 = inlined_call_operand.vmem [shape: bf16[384,8], index: 13, kind: input, shape index: {}]
  %s14 = inlined_call_operand.vmem [shape: f32[1,8], index: 14, kind: input, shape index: {}]
  %s15 = inlined_call_operand.vmem [shape: f32[1,8], index: 15, kind: input, shape index: {}]
  %s16 = inlined_call_operand.hbm [shape: f32[2,1,8], index: 16, kind: output, shape index: {}]
  %s17 = sld [smem:[#allocation0]]
  $region97: #{_lambda_.1} parent=0
    _
  %s19 = ssub.s32 1, %s17
  %s20 = scalar_select 0, %s19, %s17
  $region1: #{_lambda_.1} parent=0
    #allocation2 [shape = 'u8[1024]{0}', space=vmem, size = 0x400, scoped, tag = 'output window, operand 0']
    #allocation3 [shape = 's32[2]{0}', space=sflag, size = 0x8, scoped, tag = 'scoped memory for _lambda_.1']
    %21 = vsyncpa [#allocation3], 0
    %s22 = scalar_lea.sflag [#allocation3], 1
    %23 = vsyncpa %s22, 0
    loop: start=0, step=1, limit=4
    $region2: #{_lambda_.1} parent=1 // loop_pre_header
      _
    $region3: #{_lambda_.1} parent=1 // loop_header
      %s25 = sphi 0, %s29
      %p26 = scmp.ge.s32.totalorder %s25, 4
      %s35 = sphi 0, %s37
      %s38 = sphi 0, %s35
      %s39 = sphi 0, %s38
      %s55 = sphi 0, %s39
      %s59 = sphi 0, %s59
      %s61 = sphi 0, %s59
      %s62 = sphi 0, %s61
      %s76 = sphi 0, %s62
      %s80 = sphi 0, %s80
      %s82 = sphi 0, %s80
      %s83 = sphi 0, %s82
      %s97 = sphi 0, %s83
      %s101 = sphi 0, %s101
      %s103 = sphi 0, %s101
      %s104 = sphi 0, %s103
      %s118 = sphi 0, %s104
      %s122 = sphi 0, %s122
      %s124 = sphi 0, %s122
      %s125 = sphi 0, %s124
      %s139 = sphi 0, %s125
      %s143 = sphi 0, %s143
      %s145 = sphi 0, %s143
      %s146 = sphi 0, %s145
      %s160 = sphi 0, %s146
      %s164 = sphi 0, %s164
      %s166 = sphi 0, %s164
      %s167 = sphi 0, %s166
      %s181 = sphi 0, %s167
      %s185 = sphi 0, %s185
      %s187 = sphi 0, %s185
      %s188 = sphi 0, %s187
      %s202 = sphi 0, %s188
      %s206 = sphi 0, %s206
      %s208 = sphi 0, %s206
      %s209 = sphi 0, %s208
      %s223 = sphi 0, %s209
      %s227 = sphi 0, %s227
      %s229 = sphi 0, %s227
      %s230 = sphi 0, %s229
      %s244 = sphi 0, %s230
      %s248 = sphi 0, %s248
      %s250 = sphi 0, %s248
      %s251 = sphi 0, %s250
      %s265 = sphi 0, %s251
      %s269 = sphi 0, %s269
      %s271 = sphi 0, %s269
      %s272 = sphi 0, %s271
      %s286 = sphi 0, %s272
      %s290 = sphi 0, %s290
      %s292 = sphi 0, %s290
      %s293 = sphi 0, %s292
      %s307 = sphi 0, %s293
      %s311 = sphi 0, %s311
      %s313 = sphi 0, %s311
      %s314 = sphi 0, %s313
      %s328 = sphi 0, %s314
      %s332 = sphi 0, %s332
      %s334 = sphi 0, %s332
      %s335 = sphi 0, %s334
      %s349 = sphi 0, %s335
      %s353 = sphi 0, %s353
      %s355 = sphi 0, %s353
      %s356 = sphi 0, %s355
      %s370 = sphi 0, %s356
      %s376 = sphi 0, %s378
      %s379 = sphi 0, %s376
      %s380 = sphi 0, %s379
      %s396 = sphi 0, %s380
    $region4: #{_lambda_.1} parent=1 // loop_header_branch
      %28 = sbr.rel (%p26) target = $region8
    $region5: #{_lambda_.1} parent=1 // loop_body
      %s30 = ssub.s32 %s25, 1
      %s31 = ssub.s32 %s25, 2
      %s32 = sadd.s32 %s25, 1
      %s33 = ssub.s32 %s25, %s32
      %p34 = scmp.eq.s32.totalorder %s33, 0
      %s36 = sadd.s32 %s35, 1
      %s37 = scalar_select %p34, %s35, %s36
      %p40 = pneg %p34
      %p41 = scmp.eq.s32.totalorder %s25, 1
      %p42 = por %p40, %p41
      %p43 = scmp.ne.s32.totalorder %s35, %s38
      %p44 = scmp.eq.s32.totalorder %s25, 0
      %p45 = por %p43, %p44
      %p46 = scmp.ne.s32.totalorder %s35, %s38
      %p47 = scmp.eq.s32.totalorder %s30, 1
      %p48 = por %p46, %p47
      %p49 = scmp.ne.s32.totalorder %s38, %s39
      %p50 = scmp.eq.s32.totalorder %s30, 0
      %p51 = por %p49, %p50
      %p52 = scmp.ne.s32.totalorder %s38, %s39
      %p53 = scmp.eq.s32.totalorder %s31, 1
      %p54 = por %p52, %p53
      %p56 = scmp.ne.s32.totalorder %s39, %s55
      %p57 = scmp.eq.s32.totalorder %s31, 0
      %p58 = por %p56, %p57
      %s60 = sadd.s32 %s59, 1
      %p63 = scmp.eq.s32.totalorder %s25, 1
      %p64 = scmp.ne.s32.totalorder %s59, %s61
      %p65 = scmp.eq.s32.totalorder %s25, 0
      %p66 = por %p64, %p65
      %p67 = scmp.ne.s32.totalorder %s59, %s61
      %p68 = scmp.eq.s32.totalorder %s30, 1
      %p69 = por %p67, %p68
      %p70 = scmp.ne.s32.totalorder %s61, %s62
      %p71 = scmp.eq.s32.totalorder %s30, 0
      %p72 = por %p70, %p71
      %p73 = scmp.ne.s32.totalorder %s61, %s62
      %p74 = scmp.eq.s32.totalorder %s31, 1
      %p75 = por %p73, %p74
      %p77 = scmp.ne.s32.totalorder %s62, %s76
      %p78 = scmp.eq.s32.totalorder %s31, 0
      %p79 = por %p77, %p78
      %s81 = sadd.s32 %s80, 1
      %p84 = scmp.eq.s32.totalorder %s25, 1
      %p85 = scmp.ne.s32.totalorder %s80, %s82
      %p86 = scmp.eq.s32.totalorder %s25, 0
      %p87 = por %p85, %p86
      %p88 = scmp.ne.s32.totalorder %s80, %s82
      %p89 = scmp.eq.s32.totalorder %s30, 1
      %p90 = por %p88, %p89
      %p91 = scmp.ne.s32.totalorder %s82, %s83
      %p92 = scmp.eq.s32.totalorder %s30, 0
      %p93 = por %p91, %p92
      %p94 = scmp.ne.s32.totalorder %s82, %s83
      %p95 = scmp.eq.s32.totalorder %s31, 1
      %p96 = por %p94, %p95
      %p98 = scmp.ne.s32.totalorder %s83, %s97
      %p99 = scmp.eq.s32.totalorder %s31, 0
      %p100 = por %p98, %p99
      %s102 = sadd.s32 %s101, 1
      %p105 = scmp.eq.s32.totalorder %s25, 1
      %p106 = scmp.ne.s32.totalorder %s101, %s103
      %p107 = scmp.eq.s32.totalorder %s25, 0
      %p108 = por %p106, %p107
      %p109 = scmp.ne.s32.totalorder %s101, %s103
      %p110 = scmp.eq.s32.totalorder %s30, 1
      %p111 = por %p109, %p110
      %p112 = scmp.ne.s32.totalorder %s103, %s104
      %p113 = scmp.eq.s32.totalorder %s30, 0
      %p114 = por %p112, %p113
      %p115 = scmp.ne.s32.totalorder %s103, %s104
      %p116 = scmp.eq.s32.totalorder %s31, 1
      %p117 = por %p115, %p116
      %p119 = scmp.ne.s32.totalorder %s104, %s118
      %p120 = scmp.eq.s32.totalorder %s31, 0
      %p121 = por %p119, %p120
      %s123 = sadd.s32 %s122, 1
      %p126 = scmp.eq.s32.totalorder %s25, 1
      %p127 = scmp.ne.s32.totalorder %s122, %s124
      %p128 = scmp.eq.s32.totalorder %s25, 0
      %p129 = por %p127, %p128
      %p130 = scmp.ne.s32.totalorder %s122, %s124
      %p131 = scmp.eq.s32.totalorder %s30, 1
      %p132 = por %p130, %p131
      %p133 = scmp.ne.s32.totalorder %s124, %s125
      %p134 = scmp.eq.s32.totalorder %s30, 0
      %p135 = por %p133, %p134
      %p136 = scmp.ne.s32.totalorder %s124, %s125
      %p137 = scmp.eq.s32.totalorder %s31, 1
      %p138 = por %p136, %p137
      %p140 = scmp.ne.s32.totalorder %s125, %s139
      %p141 = scmp.eq.s32.totalorder %s31, 0
      %p142 = por %p140, %p141
      %s144 = sadd.s32 %s143, 1
      %p147 = scmp.eq.s32.totalorder %s25, 1
      %p148 = scmp.ne.s32.totalorder %s143, %s145
      %p149 = scmp.eq.s32.totalorder %s25, 0
      %p150 = por %p148, %p149
      %p151 = scmp.ne.s32.totalorder %s143, %s145
      %p152 = scmp.eq.s32.totalorder %s30, 1
      %p153 = por %p151, %p152
      %p154 = scmp.ne.s32.totalorder %s145, %s146
      %p155 = scmp.eq.s32.totalorder %s30, 0
      %p156 = por %p154, %p155
      %p157 = scmp.ne.s32.totalorder %s145, %s146
      %p158 = scmp.eq.s32.totalorder %s31, 1
      %p159 = por %p157, %p158
      %p161 = scmp.ne.s32.totalorder %s146, %s160
      %p162 = scmp.eq.s32.totalorder %s31, 0
      %p163 = por %p161, %p162
      %s165 = sadd.s32 %s164, 1
      %p168 = scmp.eq.s32.totalorder %s25, 1
      %p169 = scmp.ne.s32.totalorder %s164, %s166
      %p170 = scmp.eq.s32.totalorder %s25, 0
      %p171 = por %p169, %p170
      %p172 = scmp.ne.s32.totalorder %s164, %s166
      %p173 = scmp.eq.s32.totalorder %s30, 1
      %p174 = por %p172, %p173
      %p175 = scmp.ne.s32.totalorder %s166, %s167
      %p176 = scmp.eq.s32.totalorder %s30, 0
      %p177 = por %p175, %p176
      %p178 = scmp.ne.s32.totalorder %s166, %s167
      %p179 = scmp.eq.s32.totalorder %s31, 1
      %p180 = por %p178, %p179
      %p182 = scmp.ne.s32.totalorder %s167, %s181
      %p183 = scmp.eq.s32.totalorder %s31, 0
      %p184 = por %p182, %p183
      %s186 = sadd.s32 %s185, 1
      %p189 = scmp.eq.s32.totalorder %s25, 1
      %p190 = scmp.ne.s32.totalorder %s185, %s187
      %p191 = scmp.eq.s32.totalorder %s25, 0
      %p192 = por %p190, %p191
      %p193 = scmp.ne.s32.totalorder %s185, %s187
      %p194 = scmp.eq.s32.totalorder %s30, 1
      %p195 = por %p193, %p194
      %p196 = scmp.ne.s32.totalorder %s187, %s188
      %p197 = scmp.eq.s32.totalorder %s30, 0
      %p198 = por %p196, %p197
      %p199 = scmp.ne.s32.totalorder %s187, %s188
      %p200 = scmp.eq.s32.totalorder %s31, 1
      %p201 = por %p199, %p200
      %p203 = scmp.ne.s32.totalorder %s188, %s202
      %p204 = scmp.eq.s32.totalorder %s31, 0
      %p205 = por %p203, %p204
      %s207 = sadd.s32 %s206, 1
      %p210 = scmp.eq.s32.totalorder %s25, 1
      %p211 = scmp.ne.s32.totalorder %s206, %s208
      %p212 = scmp.eq.s32.totalorder %s25, 0
      %p213 = por %p211, %p212
      %p214 = scmp.ne.s32.totalorder %s206, %s208
      %p215 = scmp.eq.s32.totalorder %s30, 1
      %p216 = por %p214, %p215
      %p217 = scmp.ne.s32.totalorder %s208, %s209
      %p218 = scmp.eq.s32.totalorder %s30, 0
      %p219 = por %p217, %p218
      %p220 = scmp.ne.s32.totalorder %s208, %s209
      %p221 = scmp.eq.s32.totalorder %s31, 1
      %p222 = por %p220, %p221
      %p224 = scmp.ne.s32.totalorder %s209, %s223
      %p225 = scmp.eq.s32.totalorder %s31, 0
      %p226 = por %p224, %p225
      %s228 = sadd.s32 %s227, 1
      %p231 = scmp.eq.s32.totalorder %s25, 1
      %p232 = scmp.ne.s32.totalorder %s227, %s229
      %p233 = scmp.eq.s32.totalorder %s25, 0
      %p234 = por %p232, %p233
      %p235 = scmp.ne.s32.totalorder %s227, %s229
      %p236 = scmp.eq.s32.totalorder %s30, 1
      %p237 = por %p235, %p236
      %p238 = scmp.ne.s32.totalorder %s229, %s230
      %p239 = scmp.eq.s32.totalorder %s30, 0
      %p240 = por %p238, %p239
      %p241 = scmp.ne.s32.totalorder %s229, %s230
      %p242 = scmp.eq.s32.totalorder %s31, 1
      %p243 = por %p241, %p242
      %p245 = scmp.ne.s32.totalorder %s230, %s244
      %p246 = scmp.eq.s32.totalorder %s31, 0
      %p247 = por %p245, %p246
      %s249 = sadd.s32 %s248, 1
      %p252 = scmp.eq.s32.totalorder %s25, 1
      %p253 = scmp.ne.s32.totalorder %s248, %s250
      %p254 = scmp.eq.s32.totalorder %s25, 0
      %p255 = por %p253, %p254
      %p256 = scmp.ne.s32.totalorder %s248, %s250
      %p257 = scmp.eq.s32.totalorder %s30, 1
      %p258 = por %p256, %p257
      %p259 = scmp.ne.s32.totalorder %s250, %s251
      %p260 = scmp.eq.s32.totalorder %s30, 0
      %p261 = por %p259, %p260
      %p262 = scmp.ne.s32.totalorder %s250, %s251
      %p263 = scmp.eq.s32.totalorder %s31, 1
      %p264 = por %p262, %p263
      %p266 = scmp.ne.s32.totalorder %s251, %s265
      %p267 = scmp.eq.s32.totalorder %s31, 0
      %p268 = por %p266, %p267
      %s270 = sadd.s32 %s269, 1
      %p273 = scmp.eq.s32.totalorder %s25, 1
      %p274 = scmp.ne.s32.totalorder %s269, %s271
      %p275 = scmp.eq.s32.totalorder %s25, 0
      %p276 = por %p274, %p275
      %p277 = scmp.ne.s32.totalorder %s269, %s271
      %p278 = scmp.eq.s32.totalorder %s30, 1
      %p279 = por %p277, %p278
      %p280 = scmp.ne.s32.totalorder %s271, %s272
      %p281 = scmp.eq.s32.totalorder %s30, 0
      %p282 = por %p280, %p281
      %p283 = scmp.ne.s32.totalorder %s271, %s272
      %p284 = scmp.eq.s32.totalorder %s31, 1
      %p285 = por %p283, %p284
      %p287 = scmp.ne.s32.totalorder %s272, %s286
      %p288 = scmp.eq.s32.totalorder %s31, 0
      %p289 = por %p287, %p288
      %s291 = sadd.s32 %s290, 1
      %p294 = scmp.eq.s32.totalorder %s25, 1
      %p295 = scmp.ne.s32.totalorder %s290, %s292
      %p296 = scmp.eq.s32.totalorder %s25, 0
      %p297 = por %p295, %p296
      %p298 = scmp.ne.s32.totalorder %s290, %s292
      %p299 = scmp.eq.s32.totalorder %s30, 1
      %p300 = por %p298, %p299
      %p301 = scmp.ne.s32.totalorder %s292, %s293
      %p302 = scmp.eq.s32.totalorder %s30, 0
      %p303 = por %p301, %p302
      %p304 = scmp.ne.s32.totalorder %s292, %s293
      %p305 = scmp.eq.s32.totalorder %s31, 1
      %p306 = por %p304, %p305
      %p308 = scmp.ne.s32.totalorder %s293, %s307
      %p309 = scmp.eq.s32.totalorder %s31, 0
      %p310 = por %p308, %p309
      %s312 = sadd.s32 %s311, 1
      %p315 = scmp.eq.s32.totalorder %s25, 1
      %p316 = scmp.ne.s32.totalorder %s311, %s313
      %p317 = scmp.eq.s32.totalorder %s25, 0
      %p318 = por %p316, %p317
      %p319 = scmp.ne.s32.totalorder %s311, %s313
      %p320 = scmp.eq.s32.totalorder %s30, 1
      %p321 = por %p319, %p320
      %p322 = scmp.ne.s32.totalorder %s313, %s314
      %p323 = scmp.eq.s32.totalorder %s30, 0
      %p324 = por %p322, %p323
      %p325 = scmp.ne.s32.totalorder %s313, %s314
      %p326 = scmp.eq.s32.totalorder %s31, 1
      %p327 = por %p325, %p326
      %p329 = scmp.ne.s32.totalorder %s314, %s328
      %p330 = scmp.eq.s32.totalorder %s31, 0
      %p331 = por %p329, %p330
      %s333 = sadd.s32 %s332, 1
      %p336 = scmp.eq.s32.totalorder %s25, 1
      %p337 = scmp.ne.s32.totalorder %s332, %s334
      %p338 = scmp.eq.s32.totalorder %s25, 0
      %p339 = por %p337, %p338
      %p340 = scmp.ne.s32.totalorder %s332, %s334
      %p341 = scmp.eq.s32.totalorder %s30, 1
      %p342 = por %p340, %p341
      %p343 = scmp.ne.s32.totalorder %s334, %s335
      %p344 = scmp.eq.s32.totalorder %s30, 0
      %p345 = por %p343, %p344
      %p346 = scmp.ne.s32.totalorder %s334, %s335
      %p347 = scmp.eq.s32.totalorder %s31, 1
      %p348 = por %p346, %p347
      %p350 = scmp.ne.s32.totalorder %s335, %s349
      %p351 = scmp.eq.s32.totalorder %s31, 0
      %p352 = por %p350, %p351
      %s354 = sadd.s32 %s353, 1
      %p357 = scmp.eq.s32.totalorder %s25, 1
      %p358 = scmp.ne.s32.totalorder %s353, %s355
      %p359 = scmp.eq.s32.totalorder %s25, 0
      %p360 = por %p358, %p359
      %p361 = scmp.ne.s32.totalorder %s353, %s355
      %p362 = scmp.eq.s32.totalorder %s30, 1
      %p363 = por %p361, %p362
      %p364 = scmp.ne.s32.totalorder %s355, %s356
      %p365 = scmp.eq.s32.totalorder %s30, 0
      %p366 = por %p364, %p365
      %p367 = scmp.ne.s32.totalorder %s355, %s356
      %p368 = scmp.eq.s32.totalorder %s31, 1
      %p369 = por %p367, %p368
      %p371 = scmp.ne.s32.totalorder %s356, %s370
      %p372 = scmp.eq.s32.totalorder %s31, 0
      %p373 = por %p371, %p372
      %s374 = ssub.s32 %s25, %s32
      %p375 = scmp.eq.s32.totalorder %s374, 0
      %s377 = sadd.s32 %s376, 1
      %s378 = scalar_select %p375, %s376, %s377
      %p381 = pneg %p375
      %p382 = scmp.eq.s32.totalorder %s25, 1
      %p383 = por %p381, %p382
      %p384 = scmp.ne.s32.totalorder %s376, %s379
      %p385 = scmp.eq.s32.totalorder %s25, 0
      %p386 = por %p384, %p385
      %p387 = scmp.ne.s32.totalorder %s376, %s379
      %p388 = scmp.eq.s32.totalorder %s30, 1
      %p389 = por %p387, %p388
      %p390 = scmp.ne.s32.totalorder %s379, %s380
      %p391 = scmp.eq.s32.totalorder %s30, 0
      %p392 = por %p390, %p391
      %p393 = scmp.ne.s32.totalorder %s379, %s380
      %p394 = scmp.eq.s32.totalorder %s31, 1
      %p395 = por %p393, %p394
      %p397 = scmp.ne.s32.totalorder %s380, %s396
      %p398 = scmp.eq.s32.totalorder %s31, 0
      %p399 = por %p397, %p398
      %p400 = scmp.le.s32.totalorder 1, %s25
      %p401 = scmp.lt.s32.totalorder %s25, 3
      %p402 = pnand %p400, %p401
      %p403 = pneg %p402
      // Predicated region
      $region9: #{_lambda_.1} parent=5 // pred_check
        _
      $region10: #{_lambda_.1} parent=5 // pred_check_branch
        %405 = sbr.rel (%p402) target = $region12
      $region11: #{_lambda_.1} parent=5 // pred_region
        %s406 = ssub.s32 %s25, 1
        // Predicated region
        $region13: #{_lambda_.1} parent=11 // pred_check
          %p407 = pneg %p72
        $region14: #{_lambda_.1} parent=11 // pred_check_branch
          %409 = sbr.rel (%p407) target = $region16
        $region15: #{_lambda_.1} parent=11 // pred_region
          _
        $region16: #{_lambda_.1} parent=11 // pred_fallthru
          _
        // Predicated region
        $region17: #{_lambda_.1} parent=11 // pred_check
          %p410 = pneg %p93
        $region18: #{_lambda_.1} parent=11 // pred_check_branch
          %412 = sbr.rel (%p410) target = $region20
        $region19: #{_lambda_.1} parent=11 // pred_region
          _
        $region20: #{_lambda_.1} parent=11 // pred_fallthru
          _
        // Predicated region
        $region21: #{_lambda_.1} parent=11 // pred_check
          %p413 = pneg %p114
        $region22: #{_lambda_.1} parent=11 // pred_check_branch
          %415 = sbr.rel (%p413) target = $region24
        $region23: #{_lambda_.1} parent=11 // pred_region
          _
        $region24: #{_lambda_.1} parent=11 // pred_fallthru
          _
        // Predicated region
        $region25: #{_lambda_.1} parent=11 // pred_check
          %p416 = pneg %p135
        $region26: #{_lambda_.1} parent=11 // pred_check_branch
          %418 = sbr.rel (%p416) target = $region28
        $region27: #{_lambda_.1} parent=11 // pred_region
          _
        $region28: #{_lambda_.1} parent=11 // pred_fallthru
          _
        // Predicated region
        $region29: #{_lambda_.1} parent=11 // pred_check
          %p419 = pneg %p156
        $region30: #{_lambda_.1} parent=11 // pred_check_branch
          %421 = sbr.rel (%p419) target = $region32
        $region31: #{_lambda_.1} parent=11 // pred_region
          _
        $region32: #{_lambda_.1} parent=11 // pred_fallthru
          _
        // Predicated region
        $region33: #{_lambda_.1} parent=11 // pred_check
          %p422 = pneg %p177
        $region34: #{_lambda_.1} parent=11 // pred_check_branch
          %424 = sbr.rel (%p422) target = $region36
        $region35: #{_lambda_.1} parent=11 // pred_region
          _
        $region36: #{_lambda_.1} parent=11 // pred_fallthru
          _
        // Predicated region
        $region37: #{_lambda_.1} parent=11 // pred_check
          %p425 = pneg %p198
        $region38: #{_lambda_.1} parent=11 // pred_check_branch
          %427 = sbr.rel (%p425) target = $region40
        $region39: #{_lambda_.1} parent=11 // pred_region
          _
        $region40: #{_lambda_.1} parent=11 // pred_fallthru
          _
        // Predicated region
        $region41: #{_lambda_.1} parent=11 // pred_check
          %p428 = pneg %p219
        $region42: #{_lambda_.1} parent=11 // pred_check_branch
          %430 = sbr.rel (%p428) target = $region44
        $region43: #{_lambda_.1} parent=11 // pred_region
          _
        $region44: #{_lambda_.1} parent=11 // pred_fallthru
          _
        // Predicated region
        $region45: #{_lambda_.1} parent=11 // pred_check
          %p431 = pneg %p240
        $region46: #{_lambda_.1} parent=11 // pred_check_branch
          %433 = sbr.rel (%p431) target = $region48
        $region47: #{_lambda_.1} parent=11 // pred_region
          _
        $region48: #{_lambda_.1} parent=11 // pred_fallthru
          _
        // Predicated region
        $region49: #{_lambda_.1} parent=11 // pred_check
          %p434 = pneg %p261
        $region50: #{_lambda_.1} parent=11 // pred_check_branch
          %436 = sbr.rel (%p434) target = $region52
        $region51: #{_lambda_.1} parent=11 // pred_region
          _
        $region52: #{_lambda_.1} parent=11 // pred_fallthru
          _
        // Predicated region
        $region53: #{_lambda_.1} parent=11 // pred_check
          %p437 = pneg %p282
        $region54: #{_lambda_.1} parent=11 // pred_check_branch
          %439 = sbr.rel (%p437) target = $region56
        $region55: #{_lambda_.1} parent=11 // pred_region
          _
        $region56: #{_lambda_.1} parent=11 // pred_fallthru
          _
        // Predicated region
        $region57: #{_lambda_.1} parent=11 // pred_check
          %p440 = pneg %p303
        $region58: #{_lambda_.1} parent=11 // pred_check_branch
          %442 = sbr.rel (%p440) target = $region60
        $region59: #{_lambda_.1} parent=11 // pred_region
          _
        $region60: #{_lambda_.1} parent=11 // pred_fallthru
          _
        // Predicated region
        $region61: #{_lambda_.1} parent=11 // pred_check
          %p443 = pneg %p324
        $region62: #{_lambda_.1} parent=11 // pred_check_branch
          %445 = sbr.rel (%p443) target = $region64
        $region63: #{_lambda_.1} parent=11 // pred_region
          _
        $region64: #{_lambda_.1} parent=11 // pred_fallthru
          _
        // Predicated region
        $region65: #{_lambda_.1} parent=11 // pred_check
          %p446 = pneg %p345
        $region66: #{_lambda_.1} parent=11 // pred_check_branch
          %448 = sbr.rel (%p446) target = $region68
        $region67: #{_lambda_.1} parent=11 // pred_region
          _
        $region68: #{_lambda_.1} parent=11 // pred_fallthru
          _
        // Predicated region
        $region69: #{_lambda_.1} parent=11 // pred_check
          %p449 = pneg %p366
        $region70: #{_lambda_.1} parent=11 // pred_check_branch
          %451 = sbr.rel (%p449) target = $region72
        $region71: #{_lambda_.1} parent=11 // pred_region
          _
        $region72: #{_lambda_.1} parent=11 // pred_fallthru
          _
      $region12: #{_lambda_.1} parent=5 // pred_fallthru
        _
      %p452 = scmp.lt.s32.totalorder %s25, 2
      // Predicated region
      $region73: #{_lambda_.1} parent=5 // pred_check
        %p453 = pneg %p452
      $region74: #{_lambda_.1} parent=5 // pred_check_branch
        %455 = sbr.rel (%p453) target = $region76
      $region75: #{_lambda_.1} parent=5 // pred_region
        // Predicated region
        $region77: #{_lambda_.1} parent=75 // pred_check
          %p456 = pneg %p45
        $region78: #{_lambda_.1} parent=75 // pred_check_branch
          %458 = sbr.rel (%p456) target = $region80
        $region79: #{_lambda_.1} parent=75 // pred_region
          %p459 = scmp.lt.s32.totalorder %s25, 1
          %s460 = scalar_select %p459, %s25, 1
          %s461 = smul.addr %s460, 3
          %s462 = smul.addr %s461, 8
          %s463 = scalar_lea.vmem %s0, %s462
        $region80: #{_lambda_.1} parent=75 // pred_fallthru
          _
      $region76: #{_lambda_.1} parent=5 // pred_fallthru
        _
      %p464 = scmp.le.s32.totalorder 1, %s25
      %p465 = scmp.lt.s32.totalorder %s25, 3
      %p466 = pnand %p464, %p465
      %p467 = pneg %p466
      // Predicated region
      $region81: #{_lambda_.1} parent=5 // pred_check
        _
      $region82: #{_lambda_.1} parent=5 // pred_check_branch
        %469 = sbr.rel (%p466) target = $region84
      $region83: #{_lambda_.1} parent=5 // pred_region
        %s470 = ssub.s32 %s25, 1
        %p471 = scmp.lt.s32.totalorder %s30, 1
        %s472 = scalar_select %p471, %s30, 1
        %s473 = smul.addr %s472, 3
        %s474 = smul.addr %s473, 8
        %s475 = scalar_lea.vmem %s0, %s474
        %p476 = pneg %p51
        %p477 = pneg %p48
        %p478 = pneg %p72
        %p479 = pneg %p69
        %p480 = pneg %p93
        %p481 = pneg %p90
        %p482 = pneg %p114
        %p483 = pneg %p111
        %p484 = pneg %p135
        %p485 = pneg %p132
        %p486 = pneg %p156
        %p487 = pneg %p153
        %p488 = pneg %p177
        %p489 = pneg %p174
        %p490 = pneg %p198
        %p491 = pneg %p195
        %p492 = pneg %p219
        %p493 = pneg %p216
        %p494 = pneg %p240
        %p495 = pneg %p237
        %p496 = pneg %p261
        %p497 = pneg %p258
        %p498 = pneg %p282
        %p499 = pneg %p279
        %p500 = pneg %p303
        %p501 = pneg %p300
        %p502 = pneg %p324
        %p503 = pneg %p321
        %p504 = pneg %p345
        %p505 = pneg %p342
        %p506 = pneg %p366
        %p507 = pneg %p363
        %p508 = pneg %p392
        %p509 = pneg %p389
        %s510 = sand.u32 %s379, 1
        %s511 = scalar_lea.sflag [#allocation3], %s510
        %s512 = sand.u32 %s379, 1
        %s513 = scalar_lea.vmem [#allocation2], %s512
        %p514 = scmp.lt.s32.totalorder %s30, 1
        %s515 = scalar_select %p514, %s30, 1
        %s516 = smul.addr %s515, 3
        %s517 = smul.addr %s516, 8
        %s518 = scalar_lea.vmem %s0, %s517
        %v520 = vld [vmem:[%s518] sm:$0xff]
        %v521 = vld [vmem:[%s518 + $0x8] sm:$0xff]
        %v522 = vld [vmem:[%s518 + $0x10] sm:$0xf]
        %v523 = vpack.c.bf16 %v521, %v520
        %v524 = vpack.c.bf16 %v522, %v522
        %v525 = vld [vmem:[%s5] sm:$0x1]
        %v526 = vld [vmem:[%s6] sm:$0x1]
        %v527 = vld [vmem:[%s1] sm:$0xf]
        %v528 = vld [vmem:[%s1 + $0x4] sm:$0xf]
        %v529 = vld [vmem:[%s1 + $0x8] sm:$0xf]
        %v530 = vld [vmem:[%s1 + $0xc] sm:$0xf]
        %v531 = vld [vmem:[%s1 + $0x10] sm:$0xf]
        %v532 = vld [vmem:[%s1 + $0x14] sm:$0xf]
        %v533 = vld [vmem:[%s1 + $0x18] sm:$0x1]
        %v534 = vld [vmem:[%s2] sm:$0xf]
        %v535 = vld [vmem:[%s2 + $0x4] sm:$0xf]
        %v536 = vld [vmem:[%s2 + $0x8] sm:$0xf]
        %v537 = vld [vmem:[%s2 + $0xc] sm:$0xf]
        %v538 = vld [vmem:[%s2 + $0x10] sm:$0xf]
        %v539 = vld [vmem:[%s2 + $0x14] sm:$0xf]
        %v540 = vld [vmem:[%s2 + $0x18] sm:$0x1]
        %vm541 = vsmask.f32 7424
        %v543 = vshrl.u32 %v523, 16
        %v545 = vshll.u32 %v523, 16
        %v547 = vrot.slane %v545, 1
        %v548 = vor.u32 %v543, %v547
        %v550 = vshll.u32 %v524, 16
        %v552 = vrot.slane %v550, 1
        %v553 = vsel %vm541, %v548, %v552
        %v554 = vshrl.u32 %v524, 16
        %v556 = vor.u32 %v554, %v552
        %v564 = vunpack.c.l.b16 %v534
        %v565 = vunpack.c.l.b16 %v535
        %v566 = vunpack.c.l.b16 %v536
        %v567 = vunpack.c.l.b16 %v537
        %v568 = vunpack.c.l.b16 %v538
        %v569 = vunpack.c.l.b16 %v539
        %v570 = vunpack.c.l.b16 %v540
        %v571 = vpack.c.b16 %v565, %v564
        %v572 = vpack.c.b16 %v567, %v566
        %v573 = vpack.c.b16 %v569, %v568
        %v574 = vpack.c.b16 %v570, %v570
        %vm578 = vcmask 408576
        %v580 = vsel %vm578, %v553, 0
        %v583 = vsel %vm578, %v556, 0
        %vm585 = vcmask 1040384
        %v587 = vsel %vm585, %v574, 0
        %589 = vmatprep.subr.bf16.mxu0 0
        %590 = vmatpush1.bf16.msra.mxu0 %v571
        %591 = vmatprep.subr.bf16.mxu0 0
        %592 = vmatpush1.bf16.msra.mxu0 %v572
        %593 = vmatprep.subr.bf16.mxu0 0
        %594 = vmatpush1.bf16.msra.mxu0 %v573
        %595 = vmatprep.subr.bf16.mxu0 0
        %596 = vmatpush1.bf16.msra.mxu0 %v587
        %597 = vmatprep.subr.bf16.mxu0 0
        %598 = vmatpush1.bf16.msra.mxu0 0
        %599 = vmatprep.subr.bf16.mxu0 0
        %600 = vmatpush1.bf16.msra.mxu0 0
        %601 = vmatprep.subr.bf16.mxu0 0
        %602 = vmatpush1.bf16.msra.mxu0 0
        %603 = vmatprep.subr.bf16.mxu0 0
        %604 = vmatpush1.bf16.msra.mxu0 0
        %605 = vmatprep.subr.bf16.mxu0 0
        %606 = vmatpush1.bf16.msra.mxu0 0
        %607 = vmatprep.subr.bf16.mxu0 0
        %608 = vmatpush1.bf16.msra.mxu0 0
        %609 = vmatprep.subr.bf16.mxu0 0
        %610 = vmatpush1.bf16.msra.mxu0 0
        %611 = vmatprep.subr.bf16.mxu0 0
        %612 = vmatpush1.bf16.msra.mxu0 0
        %613 = vmatprep.subr.bf16.mxu0 0
        %614 = vmatpush1.bf16.msra.mxu0 0
        %615 = vmatprep.subr.bf16.mxu0 0
        %616 = vmatpush1.bf16.msra.mxu0 0
        %617 = vmatprep.subr.bf16.mxu0 0
        %618 = vmatpush1.bf16.msra.mxu0 0
        %619 = vmatprep.subr.bf16.mxu0 0
        %620 = vmatpush1.bf16.msra.mxu0 0
        %621 = vmatprep.mubr.bf16.mxu0 0
        %622 = vmatmul.mubr.bf16.gmra.mrb[0].mxu0 %v580
        %v623 = vpop.f32.mrb[0].mxu0
        %v624 = vadd.f32 0.0, %v623
        %v625 = vpop.f32.mrb[0].mxu0
        %v626 = vpop.f32.mrb[0].mxu0
        %v627 = vadd.f32 0.0, %v626
        %v628 = vpop.f32.mrb[0].mxu0
        %629 = vmatprep.mubr.bf16.mxu0 0
        %630 = vmatmul.mubr.bf16.gmra.mrb[0].mxu0 %v583
        %v631 = vpop.f32.mrb[0].mxu0
        %v632 = vadd.f32 0.0, %v631
        %v633 = vpop.f32.mrb[0].mxu0
        %v634 = vpop.f32.mrb[0].mxu0
        %v635 = vpop.f32.mrb[0].mxu0
        %636 = vdwg.mxu0
        %v644 = vunpack.c.l.b16 %v527
        %v645 = vunpack.c.l.b16 %v528
        %v646 = vunpack.c.l.b16 %v529
        %v647 = vunpack.c.l.b16 %v530
        %v648 = vunpack.c.l.b16 %v531
        %v649 = vunpack.c.l.b16 %v532
        %v650 = vunpack.c.l.b16 %v533
        %v651 = vpack.c.b16 %v645, %v644
        %v652 = vpack.c.b16 %v647, %v646
        %v653 = vpack.c.b16 %v649, %v648
        %v654 = vpack.c.b16 %v650, %v650
        %v658 = vsel %vm578, %v523, 0
        %v660 = vsel %vm578, %v524, 0
        %v663 = vsel %vm585, %v654, 0
        %665 = vmatprep.subr.bf16.mxu0 0
        %666 = vmatpush1.bf16.msra.mxu0 %v651
        %667 = vmatprep.subr.bf16.mxu0 0
        %668 = vmatpush1.bf16.msra.mxu0 %v652
        %669 = vmatprep.subr.bf16.mxu0 0
        %670 = vmatpush1.bf16.msra.mxu0 %v653
        %671 = vmatprep.subr.bf16.mxu0 0
        %672 = vmatpush1.bf16.msra.mxu0 %v663
        %673 = vmatprep.subr.bf16.mxu0 0
        %674 = vmatpush1.bf16.msra.mxu0 0
        %675 = vmatprep.subr.bf16.mxu0 0
        %676 = vmatpush1.bf16.msra.mxu0 0
        %677 = vmatprep.subr.bf16.mxu0 0
        %678 = vmatpush1.bf16.msra.mxu0 0
        %679 = vmatprep.subr.bf16.mxu0 0
        %680 = vmatpush1.bf16.msra.mxu0 0
        %681 = vmatprep.subr.bf16.mxu0 0
        %682 = vmatpush1.bf16.msra.mxu0 0
        %683 = vmatprep.subr.bf16.mxu0 0
        %684 = vmatpush1.bf16.msra.mxu0 0
        %685 = vmatprep.subr.bf16.mxu0 0
        %686 = vmatpush1.bf16.msra.mxu0 0
        %687 = vmatprep.subr.bf16.mxu0 0
        %688 = vmatpush1.bf16.msra.mxu0 0
        %689 = vmatprep.subr.bf16.mxu0 0
        %690 = vmatpush1.bf16.msra.mxu0 0
        %691 = vmatprep.subr.bf16.mxu0 0
        %692 = vmatpush1.bf16.msra.mxu0 0
        %693 = vmatprep.subr.bf16.mxu0 0
        %694 = vmatpush1.bf16.msra.mxu0 0
        %695 = vmatprep.subr.bf16.mxu0 0
        %696 = vmatpush1.bf16.msra.mxu0 0
        %697 = vmatprep.mubr.bf16.mxu0 0
        %698 = vmatmul.mubr.bf16.gmra.mrb[0].mxu0 %v658
        %v699 = vpop.f32.mrb[0].mxu0
        %v700 = vadd.f32 %v624, %v699
        %v701 = vpop.f32.mrb[0].mxu0
        %v702 = vpop.f32.mrb[0].mxu0
        %v703 = vadd.f32 %v627, %v702
        %v704 = vpop.f32.mrb[0].mxu0
        %705 = vmatprep.mubr.bf16.mxu0 0
        %706 = vmatmul.mubr.bf16.gmra.mrb[0].mxu0 %v660
        %v707 = vpop.f32.mrb[0].mxu0
        %v708 = vadd.f32 %v632, %v707
        %v709 = vpop.f32.mrb[0].mxu0
        %v710 = vpop.f32.mrb[0].mxu0
        %v711 = vpop.f32.mrb[0].mxu0
        %712 = vdwg.mxu0
        %v713 = vld [vmem:[%s3] sm:$0xf]
        %v714 = vld [vmem:[%s3 + $0x4] sm:$0xf]
        %v715 = vld [vmem:[%s3 + $0x8] sm:$0xf]
        %v716 = vld [vmem:[%s3 + $0xc] sm:$0xf]
        %v717 = vld [vmem:[%s3 + $0x10] sm:$0xf]
        %v718 = vld [vmem:[%s3 + $0x14] sm:$0xf]
        %v719 = vld [vmem:[%s3 + $0x18] sm:$0x1]
        %v720 = vld [vmem:[%s4] sm:$0xf]
        %v721 = vld [vmem:[%s4 + $0x4] sm:$0xf]
        %v722 = vld [vmem:[%s4 + $0x8] sm:$0xf]
        %v723 = vld [vmem:[%s4 + $0xc] sm:$0xf]
        %v724 = vld [vmem:[%s4 + $0x10] sm:$0xf]
        %v725 = vld [vmem:[%s4 + $0x14] sm:$0xf]
        %v726 = vld [vmem:[%s4 + $0x18] sm:$0x1]
        %v734 = vunpack.c.l.b16 %v720
        %v735 = vunpack.c.l.b16 %v721
        %v736 = vunpack.c.l.b16 %v722
        %v737 = vunpack.c.l.b16 %v723
        %v738 = vunpack.c.l.b16 %v724
        %v739 = vunpack.c.l.b16 %v725
        %v740 = vunpack.c.l.b16 %v726
        %v741 = vpack.c.b16 %v735, %v734
        %v742 = vpack.c.b16 %v737, %v736
        %v743 = vpack.c.b16 %v739, %v738
        %v744 = vpack.c.b16 %v740, %v740
        %v749 = vsel %vm585, %v744, 0
        %751 = vmatprep.subr.bf16.mxu0 0
        %752 = vmatpush1.bf16.msra.mxu0 %v741
        %753 = vmatprep.subr.bf16.mxu0 0
        %754 = vmatpush1.bf16.msra.mxu0 %v742
        %755 = vmatprep.subr.bf16.mxu0 0
        %756 = vmatpush1.bf16.msra.mxu0 %v743
        %757 = vmatprep.subr.bf16.mxu0 0
        %758 = vmatpush1.bf16.msra.mxu0 %v749
        %759 = vmatprep.subr.bf16.mxu0 0
        %760 = vmatpush1.bf16.msra.mxu0 0
        %761 = vmatprep.subr.bf16.mxu0 0
        %762 = vmatpush1.bf16.msra.mxu0 0
        %763 = vmatprep.subr.bf16.mxu0 0
        %764 = vmatpush1.bf16.msra.mxu0 0
        %765 = vmatprep.subr.bf16.mxu0 0
        %766 = vmatpush1.bf16.msra.mxu0 0
        %767 = vmatprep.subr.bf16.mxu0 0
        %768 = vmatpush1.bf16.msra.mxu0 0
        %769 = vmatprep.subr.bf16.mxu0 0
        %770 = vmatpush1.bf16.msra.mxu0 0
        %771 = vmatprep.subr.bf16.mxu0 0
        %772 = vmatpush1.bf16.msra.mxu0 0
        %773 = vmatprep.subr.bf16.mxu0 0
        %774 = vmatpush1.bf16.msra.mxu0 0
        %775 = vmatprep.subr.bf16.mxu0 0
        %776 = vmatpush1.bf16.msra.mxu0 0
        %777 = vmatprep.subr.bf16.mxu0 0
        %778 = vmatpush1.bf16.msra.mxu0 0
        %779 = vmatprep.subr.bf16.mxu0 0
        %780 = vmatpush1.bf16.msra.mxu0 0
        %781 = vmatprep.subr.bf16.mxu0 0
        %782 = vmatpush1.bf16.msra.mxu0 0
        %783 = vmatprep.mubr.bf16.mxu0 0
        %784 = vmatmul.mubr.bf16.gmra.mrb[0].mxu0 %v580
        %v785 = vpop.f32.mrb[0].mxu0
        %v786 = vadd.f32 0.0, %v785
        %v787 = vpop.f32.mrb[0].mxu0
        %v788 = vpop.f32.mrb[0].mxu0
        %v789 = vadd.f32 0.0, %v788
        %v790 = vpop.f32.mrb[0].mxu0
        %791 = vmatprep.mubr.bf16.mxu0 0
        %792 = vmatmul.mubr.bf16.gmra.mrb[0].mxu0 %v583
        %v793 = vpop.f32.mrb[0].mxu0
        %v794 = vadd.f32 0.0, %v793
        %v795 = vpop.f32.mrb[0].mxu0
        %v796 = vpop.f32.mrb[0].mxu0
        %v797 = vpop.f32.mrb[0].mxu0
        %798 = vdwg.mxu0
        %v806 = vunpack.c.l.b16 %v713
        %v807 = vunpack.c.l.b16 %v714
        %v808 = vunpack.c.l.b16 %v715
        %v809 = vunpack.c.l.b16 %v716
        %v810 = vunpack.c.l.b16 %v717
        %v811 = vunpack.c.l.b16 %v718
        %v812 = vunpack.c.l.b16 %v719
        %v813 = vpack.c.b16 %v807, %v806
        %v814 = vpack.c.b16 %v809, %v808
        %v815 = vpack.c.b16 %v811, %v810
        %v816 = vpack.c.b16 %v812, %v812
        %v821 = vsel %vm585, %v816, 0
        %823 = vmatprep.subr.bf16.mxu0 0
        %824 = vmatpush1.bf16.msra.mxu0 %v813
        %825 = vmatprep.subr.bf16.mxu0 0
        %826 = vmatpush1.bf16.msra.mxu0 %v814
        %827 = vmatprep.subr.bf16.mxu0 0
        %828 = vmatpush1.bf16.msra.mxu0 %v815
        %829 = vmatprep.subr.bf16.mxu0 0
        %830 = vmatpush1.bf16.msra.mxu0 %v821
        %831 = vmatprep.subr.bf16.mxu0 0
        %832 = vmatpush1.bf16.msra.mxu0 0
        %833 = vmatprep.subr.bf16.mxu0 0
        %834 = vmatpush1.bf16.msra.mxu0 0
        %835 = vmatprep.subr.bf16.mxu0 0
        %836 = vmatpush1.bf16.msra.mxu0 0
        %837 = vmatprep.subr.bf16.mxu0 0
        %838 = vmatpush1.bf16.msra.mxu0 0
        %839 = vmatprep.subr.bf16.mxu0 0
        %840 = vmatpush1.bf16.msra.mxu0 0
        %841 = vmatprep.subr.bf16.mxu0 0
        %842 = vmatpush1.bf16.msra.mxu0 0
        %843 = vmatprep.subr.bf16.mxu0 0
        %844 = vmatpush1.bf16.msra.mxu0 0
        %845 = vmatprep.subr.bf16.mxu0 0
        %846 = vmatpush1.bf16.msra.mxu0 0
        %847 = vmatprep.subr.bf16.mxu0 0
        %848 = vmatpush1.bf16.msra.mxu0 0
        %849 = vmatprep.subr.bf16.mxu0 0
        %850 = vmatpush1.bf16.msra.mxu0 0
        %851 = vmatprep.subr.bf16.mxu0 0
        %852 = vmatpush1.bf16.msra.mxu0 0
        %853 = vmatprep.subr.bf16.mxu0 0
        %854 = vmatpush1.bf16.msra.mxu0 0
        %855 = vmatprep.mubr.bf16.mxu0 0
        %856 = vmatmul.mubr.bf16.gmra.mrb[0].mxu0 %v658
        %v857 = vpop.f32.mrb[0].mxu0
        %v858 = vadd.f32 %v786, %v857
        %v859 = vpop.f32.mrb[0].mxu0
        %v860 = vpop.f32.mrb[0].mxu0
        %v861 = vadd.f32 %v789, %v860
        %v862 = vpop.f32.mrb[0].mxu0
        %863 = vmatprep.mubr.bf16.mxu0 0
        %864 = vmatmul.mubr.bf16.gmra.mrb[0].mxu0 %v660
        %v865 = vpop.f32.mrb[0].mxu0
        %v866 = vadd.f32 %v794, %v865
        %v867 = vpop.f32.mrb[0].mxu0
        %v868 = vpop.f32.mrb[0].mxu0
        %v869 = vpop.f32.mrb[0].mxu0
        %870 = vdwg.mxu0
        %v872 = vlaneseq
        %v873 = vshrl.u32 %v872, 7
        %v874 = vsub.s32 0, %v873
        %v875 = vrot.slane %v525, %v874
        %v877 = vmul.f32 %v700, %v875
        %v878 = vmul.f32 %v703, %v875
        %v879 = vmul.f32 %v708, %v875
        %v881 = vlaneseq
        %v882 = vshrl.u32 %v881, 7
        %v883 = vsub.s32 0, %v882
        %v884 = vrot.slane %v526, %v883
        %v886 = vadd.f32 %v877, %v884
        %v887 = vadd.f32 %v878, %v884
        %v888 = vadd.f32 %v879, %v884
        %v889 = vmax.f32 %v886, 0.0
        %v890 = vmax.f32 %v887, 0.0
        %v891 = vmax.f32 %v888, 0.0
        %v892 = vmul.f32 %v858, %v875
        %v893 = vmul.f32 %v861, %v875
        %v894 = vmul.f32 %v866, %v875
        %v895 = vadd.f32 %v892, %v884
        %v896 = vadd.f32 %v893, %v884
        %v897 = vadd.f32 %v894, %v884
        %v898 = vmax.f32 %v895, 0.0
        %v899 = vmax.f32 %v896, 0.0
        %v900 = vmax.f32 %v897, 0.0
        %v901 = vmax.f32 %v889, %v898
        %v902 = vmax.f32 %v890, %v899
        %v903 = vmax.f32 %v891, %v900
        %v904 = vpack.c.bf16 %v902, %v901
        %v905 = vld [vmem:[%s7] sm:$0xf]
        %v906 = vld [vmem:[%s7 + $0x4] sm:$0xf]
        %v907 = vld [vmem:[%s7 + $0x8] sm:$0xf]
        %v908 = vld [vmem:[%s7 + $0xc] sm:$0xf]
        %v909 = vld [vmem:[%s7 + $0x10] sm:$0xf]
        %v910 = vld [vmem:[%s7 + $0x14] sm:$0xf]
        %v911 = vld [vmem:[%s7 + $0x18] sm:$0xf]
        %v912 = vld [vmem:[%s7 + $0x1c] sm:$0xf]
        %v913 = vld [vmem:[%s7 + $0x20] sm:$0xf]
        %v914 = vld [vmem:[%s7 + $0x24] sm:$0xf]
        %v915 = vld [vmem:[%s7 + $0x28] sm:$0xf]
        %v916 = vld [vmem:[%s7 + $0x2c] sm:$0xf]
        %v917 = vld [vmem:[%s7 + $0x30] sm:$0xf]
        %v918 = vld [vmem:[%s7 + $0x34] sm:$0xf]
        %v919 = vld [vmem:[%s7 + $0x38] sm:$0xf]
        %v920 = vld [vmem:[%s7 + $0x3c] sm:$0xf]
        %v921 = vld [vmem:[%s7 + $0x40] sm:$0xf]
        %v922 = vld [vmem:[%s7 + $0x44] sm:$0xf]
        %v923 = vld [vmem:[%s7 + $0x48] sm:$0xf]
        %v924 = vld [vmem:[%s7 + $0x4c] sm:$0xf]
        %v926 = vshrl.u32 %v904, 16
        %v928 = vshll.u32 %v904, 16
        %v930 = vrot.slane %v928, 1
        %v931 = vor.u32 %v926, %v930
        %v942 = vunpack.c.l.b16 %v915
        %v943 = vunpack.c.l.b16 %v916
        %v944 = vunpack.c.l.b16 %v917
        %v945 = vunpack.c.l.b16 %v918
        %v946 = vunpack.c.l.b16 %v919
        %v947 = vunpack.c.l.b16 %v920
        %v948 = vunpack.c.l.b16 %v921
        %v949 = vunpack.c.l.b16 %v922
        %v950 = vunpack.c.l.b16 %v923
        %v951 = vunpack.c.l.b16 %v924
        %v952 = vpack.c.b16 %v943, %v942
        %v953 = vpack.c.b16 %v945, %v944
        %v954 = vpack.c.b16 %v947, %v946
        %v955 = vpack.c.b16 %v949, %v948
        %v956 = vpack.c.b16 %v951, %v950
        %vm962 = vcmask 654336
        %v964 = vsel %vm962, %v931, 0
        %966 = vmatprep.subr.bf16.mxu0 0
        %967 = vmatpush1.bf16.msra.mxu0 %v952
        %968 = vmatprep.subr.bf16.mxu0 0
        %969 = vmatpush1.bf16.msra.mxu0 %v953
        %970 = vmatprep.subr.bf16.mxu0 0
        %971 = vmatpush1.bf16.msra.mxu0 %v954
        %972 = vmatprep.subr.bf16.mxu0 0
        %973 = vmatpush1.bf16.msra.mxu0 %v955
        %974 = vmatprep.subr.bf16.mxu0 0
        %975 = vmatpush1.bf16.msra.mxu0 %v956
        %976 = vmatprep.subr.bf16.mxu0 0
        %977 = vmatpush1.bf16.msra.mxu0 0
        %978 = vmatprep.subr.bf16.mxu0 0
        %979 = vmatpush1.bf16.msra.mxu0 0
        %980 = vmatprep.subr.bf16.mxu0 0
        %981 = vmatpush1.bf16.msra.mxu0 0
        %982 = vmatprep.subr.bf16.mxu0 0
        %983 = vmatpush1.bf16.msra.mxu0 0
        %984 = vmatprep.subr.bf16.mxu0 0
        %985 = vmatpush1.bf16.msra.mxu0 0
        %986 = vmatprep.subr.bf16.mxu0 0
        %987 = vmatpush1.bf16.msra.mxu0 0
        %988 = vmatprep.subr.bf16.mxu0 0
        %989 = vmatpush1.bf16.msra.mxu0 0
        %990 = vmatprep.subr.bf16.mxu0 0
        %991 = vmatpush1.bf16.msra.mxu0 0
        %992 = vmatprep.subr.bf16.mxu0 0
        %993 = vmatpush1.bf16.msra.mxu0 0
        %994 = vmatprep.subr.bf16.mxu0 0
        %995 = vmatpush1.bf16.msra.mxu0 0
        %996 = vmatprep.subr.bf16.mxu0 0
        %997 = vmatpush1.bf16.msra.mxu0 0
        %998 = vmatprep.mubr.bf16.mxu0 0
        %999 = vmatmul.mubr.bf16.gmra.mrb[0].mxu0 %v964
        %v1000 = vpop.f32.mrb[0].mxu0
        %v1001 = vadd.f32 0.0, %v1000
        %v1002 = vpop.f32.mrb[0].mxu0
        %v1003 = vpop.f32.mrb[0].mxu0
        %v1004 = vadd.f32 0.0, %v1003
        %v1005 = vpop.f32.mrb[0].mxu0
        %1006 = vdwg.mxu0
        %v1017 = vunpack.c.l.b16 %v905
        %v1018 = vunpack.c.l.b16 %v906
        %v1019 = vunpack.c.l.b16 %v907
        %v1020 = vunpack.c.l.b16 %v908
        %v1021 = vunpack.c.l.b16 %v909
        %v1022 = vunpack.c.l.b16 %v910
        %v1023 = vunpack.c.l.b16 %v911
        %v1024 = vunpack.c.l.b16 %v912
        %v1025 = vunpack.c.l.b16 %v913
        %v1026 = vunpack.c.l.b16 %v914
        %v1027 = vpack.c.b16 %v1018, %v1017
        %v1028 = vpack.c.b16 %v1020, %v1019
        %v1029 = vpack.c.b16 %v1022, %v1021
        %v1030 = vpack.c.b16 %v1024, %v1023
        %v1031 = vpack.c.b16 %v1026, %v1025
        %v1037 = vsel %vm962, %v904, 0
        %1039 = vmatprep.subr.bf16.mxu0 0
        %1040 = vmatpush1.bf16.msra.mxu0 %v1027
        %1041 = vmatprep.subr.bf16.mxu0 0
        %1042 = vmatpush1.bf16.msra.mxu0 %v1028
        %1043 = vmatprep.subr.bf16.mxu0 0
        %1044 = vmatpush1.bf16.msra.mxu0 %v1029
        %1045 = vmatprep.subr.bf16.mxu0 0
        %1046 = vmatpush1.bf16.msra.mxu0 %v1030
        %1047 = vmatprep.subr.bf16.mxu0 0
        %1048 = vmatpush1.bf16.msra.mxu0 %v1031
        %1049 = vmatprep.subr.bf16.mxu0 0
        %1050 = vmatpush1.bf16.msra.mxu0 0
        %1051 = vmatprep.subr.bf16.mxu0 0
        %1052 = vmatpush1.bf16.msra.mxu0 0
        %1053 = vmatprep.subr.bf16.mxu0 0
        %1054 = vmatpush1.bf16.msra.mxu0 0
        %1055 = vmatprep.subr.bf16.mxu0 0
        %1056 = vmatpush1.bf16.msra.mxu0 0
        %1057 = vmatprep.subr.bf16.mxu0 0
        %1058 = vmatpush1.bf16.msra.mxu0 0
        %1059 = vmatprep.subr.bf16.mxu0 0
        %1060 = vmatpush1.bf16.msra.mxu0 0
        %1061 = vmatprep.subr.bf16.mxu0 0
        %1062 = vmatpush1.bf16.msra.mxu0 0
        %1063 = vmatprep.subr.bf16.mxu0 0
        %1064 = vmatpush1.bf16.msra.mxu0 0
        %1065 = vmatprep.subr.bf16.mxu0 0
        %1066 = vmatpush1.bf16.msra.mxu0 0
        %1067 = vmatprep.subr.bf16.mxu0 0
        %1068 = vmatpush1.bf16.msra.mxu0 0
        %1069 = vmatprep.subr.bf16.mxu0 0
        %1070 = vmatpush1.bf16.msra.mxu0 0
        %1071 = vmatprep.mubr.bf16.mxu0 0
        %1072 = vmatmul.mubr.bf16.gmra.mrb[0].mxu0 %v1037
        %v1073 = vpop.f32.mrb[0].mxu0
        %v1074 = vadd.f32 %v1001, %v1073
        %v1075 = vpop.f32.mrb[0].mxu0
        %v1076 = vpop.f32.mrb[0].mxu0
        %v1077 = vadd.f32 %v1004, %v1076
        %v1078 = vpop.f32.mrb[0].mxu0
        %1079 = vdwg.mxu0
        %v1080 = vld [vmem:[%s7 + $0x50] sm:$0xf]
        %v1081 = vld [vmem:[%s7 + $0x54] sm:$0xf]
        %v1082 = vld [vmem:[%s7 + $0x58] sm:$0xf]
        %v1083 = vld [vmem:[%s7 + $0x5c] sm:$0xf]
        %v1084 = vld [vmem:[%s7 + $0x60] sm:$0xf]
        %v1085 = vld [vmem:[%s7 + $0x64] sm:$0xf]
        %v1086 = vld [vmem:[%s7 + $0x68] sm:$0xf]
        %v1087 = vld [vmem:[%s7 + $0x6c] sm:$0xf]
        %v1088 = vld [vmem:[%s7 + $0x70] sm:$0xf]
        %v1089 = vld [vmem:[%s7 + $0x74] sm:$0xf]
        %v1091 = vrot.slane %v904, 1
        %v1102 = vunpack.c.l.b16 %v1080
        %v1103 = vunpack.c.l.b16 %v1081
        %v1104 = vunpack.c.l.b16 %v1082
        %v1105 = vunpack.c.l.b16 %v1083
        %v1106 = vunpack.c.l.b16 %v1084
        %v1107 = vunpack.c.l.b16 %v1085
        %v1108 = vunpack.c.l.b16 %v1086
        %v1109 = vunpack.c.l.b16 %v1087
        %v1110 = vunpack.c.l.b16 %v1088
        %v1111 = vunpack.c.l.b16 %v1089
        %v1112 = vpack.c.b16 %v1103, %v1102
        %v1113 = vpack.c.b16 %v1105, %v1104
        %v1114 = vpack.c.b16 %v1107, %v1106
        %v1115 = vpack.c.b16 %v1109, %v1108
        %v1116 = vpack.c.b16 %v1111, %v1110
        %v1123 = vsel %vm962, %v1091, 0
        %1125 = vmatprep.subr.bf16.mxu0 0
        %1126 = vmatpush1.bf16.msra.mxu0 %v1112
        %1127 = vmatprep.subr.bf16.mxu0 0
        %1128 = vmatpush1.bf16.msra.mxu0 %v1113
        %1129 = vmatprep.subr.bf16.mxu0 0
        %1130 = vmatpush1.bf16.msra.mxu0 %v1114
        %1131 = vmatprep.subr.bf16.mxu0 0
        %1132 = vmatpush1.bf16.msra.mxu0 %v1115
        %1133 = vmatprep.subr.bf16.mxu0 0
        %1134 = vmatpush1.bf16.msra.mxu0 %v1116
        %1135 = vmatprep.subr.bf16.mxu0 0
        %1136 = vmatpush1.bf16.msra.mxu0 0
        %1137 = vmatprep.subr.bf16.mxu0 0
        %1138 = vmatpush1.bf16.msra.mxu0 0
        %1139 = vmatprep.subr.bf16.mxu0 0
        %1140 = vmatpush1.bf16.msra.mxu0 0
        %1141 = vmatprep.subr.bf16.mxu0 0
        %1142 = vmatpush1.bf16.msra.mxu0 0
        %1143 = vmatprep.subr.bf16.mxu0 0
        %1144 = vmatpush1.bf16.msra.mxu0 0
        %1145 = vmatprep.subr.bf16.mxu0 0
        %1146 = vmatpush1.bf16.msra.mxu0 0
        %1147 = vmatprep.subr.bf16.mxu0 0
        %1148 = vmatpush1.bf16.msra.mxu0 0
        %1149 = vmatprep.subr.bf16.mxu0 0
        %1150 = vmatpush1.bf16.msra.mxu0 0
        %1151 = vmatprep.subr.bf16.mxu0 0
        %1152 = vmatpush1.bf16.msra.mxu0 0
        %1153 = vmatprep.subr.bf16.mxu0 0
        %1154 = vmatpush1.bf16.msra.mxu0 0
        %1155 = vmatprep.subr.bf16.mxu0 0
        %1156 = vmatpush1.bf16.msra.mxu0 0
        %1157 = vmatprep.mubr.bf16.mxu0 0
        %1158 = vmatmul.mubr.bf16.gmra.mrb[0].mxu0 %v1123
        %v1159 = vpop.f32.mrb[0].mxu0
        %v1160 = vadd.f32 0.0, %v1159
        %v1161 = vpop.f32.mrb[0].mxu0
        %v1162 = vpop.f32.mrb[0].mxu0
        %v1163 = vadd.f32 0.0, %v1162
        %v1164 = vpop.f32.mrb[0].mxu0
        %1165 = vdwg.mxu0
        %v1166 = vadd.f32 %v1074, %v1160
        %v1167 = vadd.f32 %v1077, %v1163
        %v1168 = vld [vmem:[%s7 + $0x78] sm:$0xf]
        %v1169 = vld [vmem:[%s7 + $0x7c] sm:$0xf]
        %v1170 = vld [vmem:[%s7 + $0x80] sm:$0xf]
        %v1171 = vld [vmem:[%s7 + $0x84] sm:$0xf]
        %v1172 = vld [vmem:[%s7 + $0x88] sm:$0xf]
        %v1173 = vld [vmem:[%s7 + $0x8c] sm:$0xf]
        %v1174 = vld [vmem:[%s7 + $0x90] sm:$0xf]
        %v1175 = vld [vmem:[%s7 + $0x94] sm:$0xf]
        %v1176 = vld [vmem:[%s7 + $0x98] sm:$0xf]
        %v1177 = vld [vmem:[%s7 + $0x9c] sm:$0xf]
        %v1178 = vrot.slane %v926, 1
        %v1179 = vrot.slane %v928, 2
        %v1180 = vor.u32 %v1178, %v1179
        %v1191 = vunpack.c.l.b16 %v1168
        %v1192 = vunpack.c.l.b16 %v1169
        %v1193 = vunpack.c.l.b16 %v1170
        %v1194 = vunpack.c.l.b16 %v1171
        %v1195 = vunpack.c.l.b16 %v1172
        %v1196 = vunpack.c.l.b16 %v1173
        %v1197 = vunpack.c.l.b16 %v1174
        %v1198 = vunpack.c.l.b16 %v1175
        %v1199 = vunpack.c.l.b16 %v1176
        %v1200 = vunpack.c.l.b16 %v1177
        %v1201 = vpack.c.b16 %v1192, %v1191
        %v1202 = vpack.c.b16 %v1194, %v1193
        %v1203 = vpack.c.b16 %v1196, %v1195
        %v1204 = vpack.c.b16 %v1198, %v1197
        %v1205 = vpack.c.b16 %v1200, %v1199
        %v1212 = vsel %vm962, %v1180, 0
        %1214 = vmatprep.subr.bf16.mxu0 0
        %1215 = vmatpush1.bf16.msra.mxu0 %v1201
        %1216 = vmatprep.subr.bf16.mxu0 0
        %1217 = vmatpush1.bf16.msra.mxu0 %v1202
        %1218 = vmatprep.subr.bf16.mxu0 0
        %1219 = vmatpush1.bf16.msra.mxu0 %v1203
        %1220 = vmatprep.subr.bf16.mxu0 0
        %1221 = vmatpush1.bf16.msra.mxu0 %v1204
        %1222 = vmatprep.subr.bf16.mxu0 0
        %1223 = vmatpush1.bf16.msra.mxu0 %v1205
        %1224 = vmatprep.subr.bf16.mxu0 0
        %1225 = vmatpush1.bf16.msra.mxu0 0
        %1226 = vmatprep.subr.bf16.mxu0 0
        %1227 = vmatpush1.bf16.msra.mxu0 0
        %1228 = vmatprep.subr.bf16.mxu0 0
        %1229 = vmatpush1.bf16.msra.mxu0 0
        %1230 = vmatprep.subr.bf16.mxu0 0
        %1231 = vmatpush1.bf16.msra.mxu0 0
        %1232 = vmatprep.subr.bf16.mxu0 0
        %1233 = vmatpush1.bf16.msra.mxu0 0
        %1234 = vmatprep.subr.bf16.mxu0 0
        %1235 = vmatpush1.bf16.msra.mxu0 0
        %1236 = vmatprep.subr.bf16.mxu0 0
        %1237 = vmatpush1.bf16.msra.mxu0 0
        %1238 = vmatprep.subr.bf16.mxu0 0
        %1239 = vmatpush1.bf16.msra.mxu0 0
        %1240 = vmatprep.subr.bf16.mxu0 0
        %1241 = vmatpush1.bf16.msra.mxu0 0
        %1242 = vmatprep.subr.bf16.mxu0 0
        %1243 = vmatpush1.bf16.msra.mxu0 0
        %1244 = vmatprep.subr.bf16.mxu0 0
        %1245 = vmatpush1.bf16.msra.mxu0 0
        %1246 = vmatprep.mubr.bf16.mxu0 0
        %1247 = vmatmul.mubr.bf16.gmra.mrb[0].mxu0 %v1212
        %v1248 = vpop.f32.mrb[0].mxu0
        %v1249 = vadd.f32 0.0, %v1248
        %v1250 = vpop.f32.mrb[0].mxu0
        %v1251 = vpop.f32.mrb[0].mxu0
        %v1252 = vadd.f32 0.0, %v1251
        %v1253 = vpop.f32.mrb[0].mxu0
        %1254 = vdwg.mxu0
        %v1255 = vadd.f32 %v1166, %v1249
        %v1256 = vadd.f32 %v1167, %v1252
        %v1257 = vld [vmem:[%s7 + $0xa0] sm:$0xf]
        %v1258 = vld [vmem:[%s7 + $0xa4] sm:$0xf]
        %v1259 = vld [vmem:[%s7 + $0xa8] sm:$0xf]
        %v1260 = vld [vmem:[%s7 + $0xac] sm:$0xf]
        %v1261 = vld [vmem:[%s7 + $0xb0] sm:$0xf]
        %v1262 = vld [vmem:[%s7 + $0xb4] sm:$0xf]
        %v1263 = vld [vmem:[%s7 + $0xb8] sm:$0xf]
        %v1264 = vld [vmem:[%s7 + $0xbc] sm:$0xf]
        %v1265 = vld [vmem:[%s7 + $0xc0] sm:$0xf]
        %v1266 = vld [vmem:[%s7 + $0xc4] sm:$0xf]
        %v1267 = vrot.slane %v904, 2
        %v1278 = vunpack.c.l.b16 %v1257
        %v1279 = vunpack.c.l.b16 %v1258
        %v1280 = vunpack.c.l.b16 %v1259
        %v1281 = vunpack.c.l.b16 %v1260
        %v1282 = vunpack.c.l.b16 %v1261
        %v1283 = vunpack.c.l.b16 %v1262
        %v1284 = vunpack.c.l.b16 %v1263
        %v1285 = vunpack.c.l.b16 %v1264
        %v1286 = vunpack.c.l.b16 %v1265
        %v1287 = vunpack.c.l.b16 %v1266
        %v1288 = vpack.c.b16 %v1279, %v1278
        %v1289 = vpack.c.b16 %v1281, %v1280
        %v1290 = vpack.c.b16 %v1283, %v1282
        %v1291 = vpack.c.b16 %v1285, %v1284
        %v1292 = vpack.c.b16 %v1287, %v1286
        %v1299 = vsel %vm962, %v1267, 0
        %1301 = vmatprep.subr.bf16.mxu0 0
        %1302 = vmatpush1.bf16.msra.mxu0 %v1288
        %1303 = vmatprep.subr.bf16.mxu0 0
        %1304 = vmatpush1.bf16.msra.mxu0 %v1289
        %1305 = vmatprep.subr.bf16.mxu0 0
        %1306 = vmatpush1.bf16.msra.mxu0 %v1290
        %1307 = vmatprep.subr.bf16.mxu0 0
        %1308 = vmatpush1.bf16.msra.mxu0 %v1291
        %1309 = vmatprep.subr.bf16.mxu0 0
        %1310 = vmatpush1.bf16.msra.mxu0 %v1292
        %1311 = vmatprep.subr.bf16.mxu0 0
        %1312 = vmatpush1.bf16.msra.mxu0 0
        %1313 = vmatprep.subr.bf16.mxu0 0
        %1314 = vmatpush1.bf16.msra.mxu0 0
        %1315 = vmatprep.subr.bf16.mxu0 0
        %1316 = vmatpush1.bf16.msra.mxu0 0
        %1317 = vmatprep.subr.bf16.mxu0 0
        %1318 = vmatpush1.bf16.msra.mxu0 0
        %1319 = vmatprep.subr.bf16.mxu0 0
        %1320 = vmatpush1.bf16.msra.mxu0 0
        %1321 = vmatprep.subr.bf16.mxu0 0
        %1322 = vmatpush1.bf16.msra.mxu0 0
        %1323 = vmatprep.subr.bf16.mxu0 0
        %1324 = vmatpush1.bf16.msra.mxu0 0
        %1325 = vmatprep.subr.bf16.mxu0 0
        %1326 = vmatpush1.bf16.msra.mxu0 0
        %1327 = vmatprep.subr.bf16.mxu0 0
        %1328 = vmatpush1.bf16.msra.mxu0 0
        %1329 = vmatprep.subr.bf16.mxu0 0
        %1330 = vmatpush1.bf16.msra.mxu0 0
        %1331 = vmatprep.subr.bf16.mxu0 0
        %1332 = vmatpush1.bf16.msra.mxu0 0
        %1333 = vmatprep.mubr.bf16.mxu0 0
        %1334 = vmatmul.mubr.bf16.gmra.mrb[0].mxu0 %v1299
        %v1335 = vpop.f32.mrb[0].mxu0
        %v1336 = vadd.f32 0.0, %v1335
        %v1337 = vpop.f32.mrb[0].mxu0
        %v1338 = vpop.f32.mrb[0].mxu0
        %v1339 = vadd.f32 0.0, %v1338
        %v1340 = vpop.f32.mrb[0].mxu0
        %1341 = vdwg.mxu0
        %v1342 = vadd.f32 %v1255, %v1336
        %v1343 = vadd.f32 %v1256, %v1339
        %v1344 = vld [vmem:[%s7 + $0xc8] sm:$0xf]
        %v1345 = vld [vmem:[%s7 + $0xcc] sm:$0xf]
        %v1346 = vld [vmem:[%s7 + $0xd0] sm:$0xf]
        %v1347 = vld [vmem:[%s7 + $0xd4] sm:$0xf]
        %v1348 = vld [vmem:[%s7 + $0xd8] sm:$0xf]
        %v1349 = vld [vmem:[%s7 + $0xdc] sm:$0xf]
        %v1350 = vld [vmem:[%s7 + $0xe0] sm:$0xf]
        %v1351 = vld [vmem:[%s7 + $0xe4] sm:$0xf]
        %v1352 = vld [vmem:[%s7 + $0xe8] sm:$0xf]
        %v1353 = vld [vmem:[%s7 + $0xec] sm:$0xf]
        %v1354 = vrot.slane %v926, 2
        %v1355 = vrot.slane %v928, 3
        %v1356 = vor.u32 %v1354, %v1355
        %v1367 = vunpack.c.l.b16 %v1344
        %v1368 = vunpack.c.l.b16 %v1345
        %v1369 = vunpack.c.l.b16 %v1346
        %v1370 = vunpack.c.l.b16 %v1347
        %v1371 = vunpack.c.l.b16 %v1348
        %v1372 = vunpack.c.l.b16 %v1349
        %v1373 = vunpack.c.l.b16 %v1350
        %v1374 = vunpack.c.l.b16 %v1351
        %v1375 = vunpack.c.l.b16 %v1352
        %v1376 = vunpack.c.l.b16 %v1353
        %v1377 = vpack.c.b16 %v1368, %v1367
        %v1378 = vpack.c.b16 %v1370, %v1369
        %v1379 = vpack.c.b16 %v1372, %v1371
        %v1380 = vpack.c.b16 %v1374, %v1373
        %v1381 = vpack.c.b16 %v1376, %v1375
        %v1388 = vsel %vm962, %v1356, 0
        %1390 = vmatprep.subr.bf16.mxu0 0
        %1391 = vmatpush1.bf16.msra.mxu0 %v1377
        %1392 = vmatprep.subr.bf16.mxu0 0
        %1393 = vmatpush1.bf16.msra.mxu0 %v1378
        %1394 = vmatprep.subr.bf16.mxu0 0
        %1395 = vmatpush1.bf16.msra.mxu0 %v1379
        %1396 = vmatprep.subr.bf16.mxu0 0
        %1397 = vmatpush1.bf16.msra.mxu0 %v1380
        %1398 = vmatprep.subr.bf16.mxu0 0
        %1399 = vmatpush1.bf16.msra.mxu0 %v1381
        %1400 = vmatprep.subr.bf16.mxu0 0
        %1401 = vmatpush1.bf16.msra.mxu0 0
        %1402 = vmatprep.subr.bf16.mxu0 0
        %1403 = vmatpush1.bf16.msra.mxu0 0
        %1404 = vmatprep.subr.bf16.mxu0 0
        %1405 = vmatpush1.bf16.msra.mxu0 0
        %1406 = vmatprep.subr.bf16.mxu0 0
        %1407 = vmatpush1.bf16.msra.mxu0 0
        %1408 = vmatprep.subr.bf16.mxu0 0
        %1409 = vmatpush1.bf16.msra.mxu0 0
        %1410 = vmatprep.subr.bf16.mxu0 0
        %1411 = vmatpush1.bf16.msra.mxu0 0
        %1412 = vmatprep.subr.bf16.mxu0 0
        %1413 = vmatpush1.bf16.msra.mxu0 0
        %1414 = vmatprep.subr.bf16.mxu0 0
        %1415 = vmatpush1.bf16.msra.mxu0 0
        %1416 = vmatprep.subr.bf16.mxu0 0
        %1417 = vmatpush1.bf16.msra.mxu0 0
        %1418 = vmatprep.subr.bf16.mxu0 0
        %1419 = vmatpush1.bf16.msra.mxu0 0
        %1420 = vmatprep.subr.bf16.mxu0 0
        %1421 = vmatpush1.bf16.msra.mxu0 0
        %1422 = vmatprep.mubr.bf16.mxu0 0
        %1423 = vmatmul.mubr.bf16.gmra.mrb[0].mxu0 %v1388
        %v1424 = vpop.f32.mrb[0].mxu0
        %v1425 = vadd.f32 0.0, %v1424
        %v1426 = vpop.f32.mrb[0].mxu0
        %v1427 = vpop.f32.mrb[0].mxu0
        %v1428 = vadd.f32 0.0, %v1427
        %v1429 = vpop.f32.mrb[0].mxu0
        %1430 = vdwg.mxu0
        %v1431 = vadd.f32 %v1342, %v1425
        %v1432 = vadd.f32 %v1343, %v1428
        %v1433 = vpack.c.bf16 %v903, %v903
        %v1434 = vld [vmem:[%s7 + $0xf0] sm:$0xf]
        %v1435 = vld [vmem:[%s7 + $0xf4] sm:$0xf]
        %v1436 = vld [vmem:[%s7 + $0xf8] sm:$0xf]
        %v1437 = vld [vmem:[%s7 + $0xfc] sm:$0xf]
        %v1438 = vld [vmem:[%s7 + $0x100] sm:$0xf]
        %v1439 = vld [vmem:[%s7 + $0x104] sm:$0xf]
        %v1440 = vld [vmem:[%s7 + $0x108] sm:$0xf]
        %v1441 = vld [vmem:[%s7 + $0x10c] sm:$0xf]
        %v1442 = vld [vmem:[%s7 + $0x110] sm:$0xf]
        %v1443 = vld [vmem:[%s7 + $0x114] sm:$0xf]
        %vm1445 = vcmask 1044480
        %v1446 = vrot.slane %v904, 3
        %v1447 = vrot.slane %v1433, 3
        %v1448 = vsel %vm1445, %v1446, %v1447
        %v1459 = vunpack.c.l.b16 %v1434
        %v1460 = vunpack.c.l.b16 %v1435
        %v1461 = vunpack.c.l.b16 %v1436
        %v1462 = vunpack.c.l.b16 %v1437
        %v1463 = vunpack.c.l.b16 %v1438
        %v1464 = vunpack.c.l.b16 %v1439
        %v1465 = vunpack.c.l.b16 %v1440
        %v1466 = vunpack.c.l.b16 %v1441
        %v1467 = vunpack.c.l.b16 %v1442
        %v1468 = vunpack.c.l.b16 %v1443
        %v1469 = vpack.c.b16 %v1460, %v1459
        %v1470 = vpack.c.b16 %v1462, %v1461
        %v1471 = vpack.c.b16 %v1464, %v1463
        %v1472 = vpack.c.b16 %v1466, %v1465
        %v1473 = vpack.c.b16 %v1468, %v1467
        %v1480 = vsel %vm962, %v1448, 0
        %1482 = vmatprep.subr.bf16.mxu0 0
        %1483 = vmatpush1.bf16.msra.mxu0 %v1469
        %1484 = vmatprep.subr.bf16.mxu0 0
        %1485 = vmatpush1.bf16.msra.mxu0 %v1470
        %1486 = vmatprep.subr.bf16.mxu0 0
        %1487 = vmatpush1.bf16.msra.mxu0 %v1471
        %1488 = vmatprep.subr.bf16.mxu0 0
        %1489 = vmatpush1.bf16.msra.mxu0 %v1472
        %1490 = vmatprep.subr.bf16.mxu0 0
        %1491 = vmatpush1.bf16.msra.mxu0 %v1473
        %1492 = vmatprep.subr.bf16.mxu0 0
        %1493 = vmatpush1.bf16.msra.mxu0 0
        %1494 = vmatprep.subr.bf16.mxu0 0
        %1495 = vmatpush1.bf16.msra.mxu0 0
        %1496 = vmatprep.subr.bf16.mxu0 0
        %1497 = vmatpush1.bf16.msra.mxu0 0
        %1498 = vmatprep.subr.bf16.mxu0 0
        %1499 = vmatpush1.bf16.msra.mxu0 0
        %1500 = vmatprep.subr.bf16.mxu0 0
        %1501 = vmatpush1.bf16.msra.mxu0 0
        %1502 = vmatprep.subr.bf16.mxu0 0
        %1503 = vmatpush1.bf16.msra.mxu0 0
        %1504 = vmatprep.subr.bf16.mxu0 0
        %1505 = vmatpush1.bf16.msra.mxu0 0
        %1506 = vmatprep.subr.bf16.mxu0 0
        %1507 = vmatpush1.bf16.msra.mxu0 0
        %1508 = vmatprep.subr.bf16.mxu0 0
        %1509 = vmatpush1.bf16.msra.mxu0 0
        %1510 = vmatprep.subr.bf16.mxu0 0
        %1511 = vmatpush1.bf16.msra.mxu0 0
        %1512 = vmatprep.subr.bf16.mxu0 0
        %1513 = vmatpush1.bf16.msra.mxu0 0
        %1514 = vmatprep.mubr.bf16.mxu0 0
        %1515 = vmatmul.mubr.bf16.gmra.mrb[0].mxu0 %v1480
        %v1516 = vpop.f32.mrb[0].mxu0
        %v1517 = vadd.f32 0.0, %v1516
        %v1518 = vpop.f32.mrb[0].mxu0
        %v1519 = vpop.f32.mrb[0].mxu0
        %v1520 = vadd.f32 0.0, %v1519
        %v1521 = vpop.f32.mrb[0].mxu0
        %1522 = vdwg.mxu0
        %v1523 = vadd.f32 %v1431, %v1517
        %v1524 = vadd.f32 %v1432, %v1520
        %v1525 = vld [vmem:[%s7 + $0x118] sm:$0xf]
        %v1526 = vld [vmem:[%s7 + $0x11c] sm:$0xf]
        %v1527 = vld [vmem:[%s7 + $0x120] sm:$0xf]
        %v1528 = vld [vmem:[%s7 + $0x124] sm:$0xf]
        %v1529 = vld [vmem:[%s7 + $0x128] sm:$0xf]
        %v1530 = vld [vmem:[%s7 + $0x12c] sm:$0xf]
        %v1531 = vld [vmem:[%s7 + $0x130] sm:$0xf]
        %v1532 = vld [vmem:[%s7 + $0x134] sm:$0xf]
        %v1533 = vld [vmem:[%s7 + $0x138] sm:$0xf]
        %v1534 = vld [vmem:[%s7 + $0x13c] sm:$0xf]
        %vm1535 = vsmask.f32 4352
        %v1536 = vrot.slane %v926, 3
        %v1537 = vrot.slane %v928, 4
        %v1538 = vor.u32 %v1536, %v1537
        %v1540 = vshrl.u32 %v1433, 16
        %v1542 = vrot.slane %v1540, 3
        %v1543 = vshll.u32 %v1433, 16
        %v1545 = vrot.slane %v1543, 4
        %v1546 = vor.u32 %v1542, %v1545
        %v1547 = vsel %vm1535, %v1538, %v1546
        %v1558 = vunpack.c.l.b16 %v1525
        %v1559 = vunpack.c.l.b16 %v1526
        %v1560 = vunpack.c.l.b16 %v1527
        %v1561 = vunpack.c.l.b16 %v1528
        %v1562 = vunpack.c.l.b16 %v1529
        %v1563 = vunpack.c.l.b16 %v1530
        %v1564 = vunpack.c.l.b16 %v1531
        %v1565 = vunpack.c.l.b16 %v1532
        %v1566 = vunpack.c.l.b16 %v1533
        %v1567 = vunpack.c.l.b16 %v1534
        %v1568 = vpack.c.b16 %v1559, %v1558
        %v1569 = vpack.c.b16 %v1561, %v1560
        %v1570 = vpack.c.b16 %v1563, %v1562
        %v1571 = vpack.c.b16 %v1565, %v1564
        %v1572 = vpack.c.b16 %v1567, %v1566
        %v1579 = vsel %vm962, %v1547, 0
        %1581 = vmatprep.subr.bf16.mxu0 0
        %1582 = vmatpush1.bf16.msra.mxu0 %v1568
        %1583 = vmatprep.subr.bf16.mxu0 0
        %1584 = vmatpush1.bf16.msra.mxu0 %v1569
        %1585 = vmatprep.subr.bf16.mxu0 0
        %1586 = vmatpush1.bf16.msra.mxu0 %v1570
        %1587 = vmatprep.subr.bf16.mxu0 0
        %1588 = vmatpush1.bf16.msra.mxu0 %v1571
        %1589 = vmatprep.subr.bf16.mxu0 0
        %1590 = vmatpush1.bf16.msra.mxu0 %v1572
        %1591 = vmatprep.subr.bf16.mxu0 0
        %1592 = vmatpush1.bf16.msra.mxu0 0
        %1593 = vmatprep.subr.bf16.mxu0 0
        %1594 = vmatpush1.bf16.msra.mxu0 0
        %1595 = vmatprep.subr.bf16.mxu0 0
        %1596 = vmatpush1.bf16.msra.mxu0 0
        %1597 = vmatprep.subr.bf16.mxu0 0
        %1598 = vmatpush1.bf16.msra.mxu0 0
        %1599 = vmatprep.subr.bf16.mxu0 0
        %1600 = vmatpush1.bf16.msra.mxu0 0
        %1601 = vmatprep.subr.bf16.mxu0 0
        %1602 = vmatpush1.bf16.msra.mxu0 0
        %1603 = vmatprep.subr.bf16.mxu0 0
        %1604 = vmatpush1.bf16.msra.mxu0 0
        %1605 = vmatprep.subr.bf16.mxu0 0
        %1606 = vmatpush1.bf16.msra.mxu0 0
        %1607 = vmatprep.subr.bf16.mxu0 0
        %1608 = vmatpush1.bf16.msra.mxu0 0
        %1609 = vmatprep.subr.bf16.mxu0 0
        %1610 = vmatpush1.bf16.msra.mxu0 0
        %1611 = vmatprep.subr.bf16.mxu0 0
        %1612 = vmatpush1.bf16.msra.mxu0 0
        %1613 = vmatprep.mubr.bf16.mxu0 0
        %1614 = vmatmul.mubr.bf16.gmra.mrb[0].mxu0 %v1579
        %v1615 = vpop.f32.mrb[0].mxu0
        %v1616 = vadd.f32 0.0, %v1615
        %v1617 = vpop.f32.mrb[0].mxu0
        %v1618 = vpop.f32.mrb[0].mxu0
        %v1619 = vadd.f32 0.0, %v1618
        %v1620 = vpop.f32.mrb[0].mxu0
        %1621 = vdwg.mxu0
        %v1622 = vadd.f32 %v1523, %v1616
        %v1623 = vadd.f32 %v1524, %v1619
        %v1624 = vpack.c.bf16 %v903, %v902
        %v1625 = vld [vmem:[%s7 + $0x140] sm:$0xf]
        %v1626 = vld [vmem:[%s7 + $0x144] sm:$0xf]
        %v1627 = vld [vmem:[%s7 + $0x148] sm:$0xf]
        %v1628 = vld [vmem:[%s7 + $0x14c] sm:$0xf]
        %v1629 = vld [vmem:[%s7 + $0x150] sm:$0xf]
        %v1630 = vld [vmem:[%s7 + $0x154] sm:$0xf]
        %v1631 = vld [vmem:[%s7 + $0x158] sm:$0xf]
        %v1632 = vld [vmem:[%s7 + $0x15c] sm:$0xf]
        %v1633 = vld [vmem:[%s7 + $0x160] sm:$0xf]
        %v1634 = vld [vmem:[%s7 + $0x164] sm:$0xf]
        %v1645 = vunpack.c.l.b16 %v1625
        %v1646 = vunpack.c.l.b16 %v1626
        %v1647 = vunpack.c.l.b16 %v1627
        %v1648 = vunpack.c.l.b16 %v1628
        %v1649 = vunpack.c.l.b16 %v1629
        %v1650 = vunpack.c.l.b16 %v1630
        %v1651 = vunpack.c.l.b16 %v1631
        %v1652 = vunpack.c.l.b16 %v1632
        %v1653 = vunpack.c.l.b16 %v1633
        %v1654 = vunpack.c.l.b16 %v1634
        %v1655 = vpack.c.b16 %v1646, %v1645
        %v1656 = vpack.c.b16 %v1648, %v1647
        %v1657 = vpack.c.b16 %v1650, %v1649
        %v1658 = vpack.c.b16 %v1652, %v1651
        %v1659 = vpack.c.b16 %v1654, %v1653
        %v1666 = vsel %vm962, %v1624, 0
        %1668 = vmatprep.subr.bf16.mxu0 0
        %1669 = vmatpush1.bf16.msra.mxu0 %v1655
        %1670 = vmatprep.subr.bf16.mxu0 0
        %1671 = vmatpush1.bf16.msra.mxu0 %v1656
        %1672 = vmatprep.subr.bf16.mxu0 0
        %1673 = vmatpush1.bf16.msra.mxu0 %v1657
        %1674 = vmatprep.subr.bf16.mxu0 0
        %1675 = vmatpush1.bf16.msra.mxu0 %v1658
        %1676 = vmatprep.subr.bf16.mxu0 0
        %1677 = vmatpush1.bf16.msra.mxu0 %v1659
        %1678 = vmatprep.subr.bf16.mxu0 0
        %1679 = vmatpush1.bf16.msra.mxu0 0
        %1680 = vmatprep.subr.bf16.mxu0 0
        %1681 = vmatpush1.bf16.msra.mxu0 0
        %1682 = vmatprep.subr.bf16.mxu0 0
        %1683 = vmatpush1.bf16.msra.mxu0 0
        %1684 = vmatprep.subr.bf16.mxu0 0
        %1685 = vmatpush1.bf16.msra.mxu0 0
        %1686 = vmatprep.subr.bf16.mxu0 0
        %1687 = vmatpush1.bf16.msra.mxu0 0
        %1688 = vmatprep.subr.bf16.mxu0 0
        %1689 = vmatpush1.bf16.msra.mxu0 0
        %1690 = vmatprep.subr.bf16.mxu0 0
        %1691 = vmatpush1.bf16.msra.mxu0 0
        %1692 = vmatprep.subr.bf16.mxu0 0
        %1693 = vmatpush1.bf16.msra.mxu0 0
        %1694 = vmatprep.subr.bf16.mxu0 0
        %1695 = vmatpush1.bf16.msra.mxu0 0
        %1696 = vmatprep.subr.bf16.mxu0 0
        %1697 = vmatpush1.bf16.msra.mxu0 0
        %1698 = vmatprep.subr.bf16.mxu0 0
        %1699 = vmatpush1.bf16.msra.mxu0 0
        %1700 = vmatprep.mubr.bf16.mxu0 0
        %1701 = vmatmul.mubr.bf16.gmra.mrb[0].mxu0 %v1666
        %v1702 = vpop.f32.mrb[0].mxu0
        %v1703 = vadd.f32 0.0, %v1702
        %v1704 = vpop.f32.mrb[0].mxu0
        %v1705 = vpop.f32.mrb[0].mxu0
        %v1706 = vadd.f32 0.0, %v1705
        %v1707 = vpop.f32.mrb[0].mxu0
        %1708 = vdwg.mxu0
        %v1709 = vadd.f32 %v1622, %v1703
        %v1710 = vadd.f32 %v1623, %v1706
        %v1711 = vld [vmem:[%s8] sm:$0x1]
        %v1713 = vlaneseq
        %v1714 = vshrl.u32 %v1713, 7
        %v1715 = vsub.s32 0, %v1714
        %v1716 = vrot.slane %v1711, %v1715
        %v1718 = vmul.f32 %v1709, %v1716
        %v1719 = vmul.f32 %v1710, %v1716
        %v1720 = vld [vmem:[%s9] sm:$0x1]
        %v1722 = vlaneseq
        %v1723 = vshrl.u32 %v1722, 7
        %v1724 = vsub.s32 0, %v1723
        %v1725 = vrot.slane %v1720, %v1724
        %v1727 = vadd.f32 %v1718, %v1725
        %v1728 = vadd.f32 %v1719, %v1725
        %v1729 = vmax.f32 %v1727, 0.0
        %v1730 = vmax.f32 %v1728, 0.0
        %v1732 = vrot.slane %v1729, 1
        %v1734 = vmax.f32 %v1729, %v1732
        %v1736 = vrot.slane %v1730, 1
        %v1738 = vmax.f32 %v1730, %v1736
        %v1739 = vld [vmem:[%s11] sm:$0x1]
        %v1740 = vld [vmem:[%s12] sm:$0x1]
        %v1741 = vpack.c.bf16 %v1734, %v1734
        %v1742 = vld [vmem:[%s10] sm:$0xf]
        %v1743 = vld [vmem:[%s10 + $0x4] sm:$0xf]
        %v1744 = vld [vmem:[%s10 + $0x8] sm:$0xf]
        %v1745 = vld [vmem:[%s10 + $0xc] sm:$0xf]
        %v1746 = vld [vmem:[%s10 + $0x10] sm:$0xf]
        %v1747 = vld [vmem:[%s10 + $0x14] sm:$0xf]
        %v1748 = vld [vmem:[%s10 + $0x18] sm:$0xf]
        %v1749 = vld [vmem:[%s10 + $0x1c] sm:$0xf]
        %v1750 = vld [vmem:[%s10 + $0x20] sm:$0xf]
        %v1751 = vld [vmem:[%s10 + $0x24] sm:$0xf]
        %v1752 = vld [vmem:[%s10 + $0x28] sm:$0xf]
        %v1753 = vld [vmem:[%s10 + $0x2c] sm:$0xf]
        %v1754 = vld [vmem:[%s10 + $0x30] sm:$0xf]
        %v1755 = vld [vmem:[%s10 + $0x34] sm:$0xf]
        %v1756 = vld [vmem:[%s10 + $0x38] sm:$0xf]
        %v1757 = vld [vmem:[%s10 + $0x3c] sm:$0xf]
        %v1759 = vrot.slane %v1741, 1
        %v1768 = vunpack.c.l.b16 %v1750
        %v1769 = vunpack.c.l.b16 %v1751
        %v1770 = vunpack.c.l.b16 %v1752
        %v1771 = vunpack.c.l.b16 %v1753
        %v1772 = vunpack.c.l.b16 %v1754
        %v1773 = vunpack.c.l.b16 %v1755
        %v1774 = vunpack.c.l.b16 %v1756
        %v1775 = vunpack.c.l.b16 %v1757
        %v1776 = vpack.c.b16 %v1769, %v1768
        %v1777 = vpack.c.b16 %v1771, %v1770
        %v1778 = vpack.c.b16 %v1773, %v1772
        %v1779 = vpack.c.b16 %v1775, %v1774
        %vm1784 = vcmask 523264
        %v1786 = vsel %vm1784, %v1759, 0
        %1788 = vmatprep.subr.bf16.mxu0 0
        %1789 = vmatpush1.bf16.msra.mxu0 %v1776
        %1790 = vmatprep.subr.bf16.mxu0 0
        %1791 = vmatpush1.bf16.msra.mxu0 %v1777
        %1792 = vmatprep.subr.bf16.mxu0 0
        %1793 = vmatpush1.bf16.msra.mxu0 %v1778
        %1794 = vmatprep.subr.bf16.mxu0 0
        %1795 = vmatpush1.bf16.msra.mxu0 %v1779
        %1796 = vmatprep.subr.bf16.mxu0 0
        %1797 = vmatpush1.bf16.msra.mxu0 0
        %1798 = vmatprep.subr.bf16.mxu0 0
        %1799 = vmatpush1.bf16.msra.mxu0 0
        %1800 = vmatprep.subr.bf16.mxu0 0
        %1801 = vmatpush1.bf16.msra.mxu0 0
        %1802 = vmatprep.subr.bf16.mxu0 0
        %1803 = vmatpush1.bf16.msra.mxu0 0
        %1804 = vmatprep.subr.bf16.mxu0 0
        %1805 = vmatpush1.bf16.msra.mxu0 0
        %1806 = vmatprep.subr.bf16.mxu0 0
        %1807 = vmatpush1.bf16.msra.mxu0 0
        %1808 = vmatprep.subr.bf16.mxu0 0
        %1809 = vmatpush1.bf16.msra.mxu0 0
        %1810 = vmatprep.subr.bf16.mxu0 0
        %1811 = vmatpush1.bf16.msra.mxu0 0
        %1812 = vmatprep.subr.bf16.mxu0 0
        %1813 = vmatpush1.bf16.msra.mxu0 0
        %1814 = vmatprep.subr.bf16.mxu0 0
        %1815 = vmatpush1.bf16.msra.mxu0 0
        %1816 = vmatprep.subr.bf16.mxu0 0
        %1817 = vmatpush1.bf16.msra.mxu0 0
        %1818 = vmatprep.subr.bf16.mxu0 0
        %1819 = vmatpush1.bf16.msra.mxu0 0
        %1820 = vmatprep.mubr.bf16.mxu0 0
        %1821 = vmatmul.mubr.bf16.gmra.mrb[0].mxu0 %v1786
        %v1822 = vpop.f32.mrb[0].mxu0
        %v1823 = vadd.f32 0.0, %v1822
        %v1824 = vpop.f32.mrb[0].mxu0
        %v1825 = vpop.f32.mrb[0].mxu0
        %v1826 = vpop.f32.mrb[0].mxu0
        %1827 = vdwg.mxu0
        %v1836 = vunpack.c.l.b16 %v1742
        %v1837 = vunpack.c.l.b16 %v1743
        %v1838 = vunpack.c.l.b16 %v1744
        %v1839 = vunpack.c.l.b16 %v1745
        %v1840 = vunpack.c.l.b16 %v1746
        %v1841 = vunpack.c.l.b16 %v1747
        %v1842 = vunpack.c.l.b16 %v1748
        %v1843 = vunpack.c.l.b16 %v1749
        %v1844 = vpack.c.b16 %v1837, %v1836
        %v1845 = vpack.c.b16 %v1839, %v1838
        %v1846 = vpack.c.b16 %v1841, %v1840
        %v1847 = vpack.c.b16 %v1843, %v1842
        %v1853 = vsel %vm1784, %v1741, 0
        %1855 = vmatprep.subr.bf16.mxu0 0
        %1856 = vmatpush1.bf16.msra.mxu0 %v1844
        %1857 = vmatprep.subr.bf16.mxu0 0
        %1858 = vmatpush1.bf16.msra.mxu0 %v1845
        %1859 = vmatprep.subr.bf16.mxu0 0
        %1860 = vmatpush1.bf16.msra.mxu0 %v1846
        %1861 = vmatprep.subr.bf16.mxu0 0
        %1862 = vmatpush1.bf16.msra.mxu0 %v1847
        %1863 = vmatprep.subr.bf16.mxu0 0
        %1864 = vmatpush1.bf16.msra.mxu0 0
        %1865 = vmatprep.subr.bf16.mxu0 0
        %1866 = vmatpush1.bf16.msra.mxu0 0
        %1867 = vmatprep.subr.bf16.mxu0 0
        %1868 = vmatpush1.bf16.msra.mxu0 0
        %1869 = vmatprep.subr.bf16.mxu0 0
        %1870 = vmatpush1.bf16.msra.mxu0 0
        %1871 = vmatprep.subr.bf16.mxu0 0
        %1872 = vmatpush1.bf16.msra.mxu0 0
        %1873 = vmatprep.subr.bf16.mxu0 0
        %1874 = vmatpush1.bf16.msra.mxu0 0
        %1875 = vmatprep.subr.bf16.mxu0 0
        %1876 = vmatpush1.bf16.msra.mxu0 0
        %1877 = vmatprep.subr.bf16.mxu0 0
        %1878 = vmatpush1.bf16.msra.mxu0 0
        %1879 = vmatprep.subr.bf16.mxu0 0
        %1880 = vmatpush1.bf16.msra.mxu0 0
        %1881 = vmatprep.subr.bf16.mxu0 0
        %1882 = vmatpush1.bf16.msra.mxu0 0
        %1883 = vmatprep.subr.bf16.mxu0 0
        %1884 = vmatpush1.bf16.msra.mxu0 0
        %1885 = vmatprep.subr.bf16.mxu0 0
        %1886 = vmatpush1.bf16.msra.mxu0 0
        %1887 = vmatprep.mubr.bf16.mxu0 0
        %1888 = vmatmul.mubr.bf16.gmra.mrb[0].mxu0 %v1853
        %v1889 = vpop.f32.mrb[0].mxu0
        %v1890 = vadd.f32 %v1823, %v1889
        %v1891 = vpop.f32.mrb[0].mxu0
        %v1892 = vpop.f32.mrb[0].mxu0
        %v1893 = vpop.f32.mrb[0].mxu0
        %1894 = vdwg.mxu0
        %v1895 = vld [vmem:[%s10 + $0x40] sm:$0xf]
        %v1896 = vld [vmem:[%s10 + $0x44] sm:$0xf]
        %v1897 = vld [vmem:[%s10 + $0x48] sm:$0xf]
        %v1898 = vld [vmem:[%s10 + $0x4c] sm:$0xf]
        %v1899 = vld [vmem:[%s10 + $0x50] sm:$0xf]
        %v1900 = vld [vmem:[%s10 + $0x54] sm:$0xf]
        %v1901 = vld [vmem:[%s10 + $0x58] sm:$0xf]
        %v1902 = vld [vmem:[%s10 + $0x5c] sm:$0xf]
        %v1903 = vrot.slane %v1741, 2
        %v1912 = vunpack.c.l.b16 %v1895
        %v1913 = vunpack.c.l.b16 %v1896
        %v1914 = vunpack.c.l.b16 %v1897
        %v1915 = vunpack.c.l.b16 %v1898
        %v1916 = vunpack.c.l.b16 %v1899
        %v1917 = vunpack.c.l.b16 %v1900
        %v1918 = vunpack.c.l.b16 %v1901
        %v1919 = vunpack.c.l.b16 %v1902
        %v1920 = vpack.c.b16 %v1913, %v1912
        %v1921 = vpack.c.b16 %v1915, %v1914
        %v1922 = vpack.c.b16 %v1917, %v1916
        %v1923 = vpack.c.b16 %v1919, %v1918
        %v1929 = vsel %vm1784, %v1903, 0
        %1931 = vmatprep.subr.bf16.mxu0 0
        %1932 = vmatpush1.bf16.msra.mxu0 %v1920
        %1933 = vmatprep.subr.bf16.mxu0 0
        %1934 = vmatpush1.bf16.msra.mxu0 %v1921
        %1935 = vmatprep.subr.bf16.mxu0 0
        %1936 = vmatpush1.bf16.msra.mxu0 %v1922
        %1937 = vmatprep.subr.bf16.mxu0 0
        %1938 = vmatpush1.bf16.msra.mxu0 %v1923
        %1939 = vmatprep.subr.bf16.mxu0 0
        %1940 = vmatpush1.bf16.msra.mxu0 0
        %1941 = vmatprep.subr.bf16.mxu0 0
        %1942 = vmatpush1.bf16.msra.mxu0 0
        %1943 = vmatprep.subr.bf16.mxu0 0
        %1944 = vmatpush1.bf16.msra.mxu0 0
        %1945 = vmatprep.subr.bf16.mxu0 0
        %1946 = vmatpush1.bf16.msra.mxu0 0
        %1947 = vmatprep.subr.bf16.mxu0 0
        %1948 = vmatpush1.bf16.msra.mxu0 0
        %1949 = vmatprep.subr.bf16.mxu0 0
        %1950 = vmatpush1.bf16.msra.mxu0 0
        %1951 = vmatprep.subr.bf16.mxu0 0
        %1952 = vmatpush1.bf16.msra.mxu0 0
        %1953 = vmatprep.subr.bf16.mxu0 0
        %1954 = vmatpush1.bf16.msra.mxu0 0
        %1955 = vmatprep.subr.bf16.mxu0 0
        %1956 = vmatpush1.bf16.msra.mxu0 0
        %1957 = vmatprep.subr.bf16.mxu0 0
        %1958 = vmatpush1.bf16.msra.mxu0 0
        %1959 = vmatprep.subr.bf16.mxu0 0
        %1960 = vmatpush1.bf16.msra.mxu0 0
        %1961 = vmatprep.subr.bf16.mxu0 0
        %1962 = vmatpush1.bf16.msra.mxu0 0
        %1963 = vmatprep.mubr.bf16.mxu0 0
        %1964 = vmatmul.mubr.bf16.gmra.mrb[0].mxu0 %v1929
        %v1965 = vpop.f32.mrb[0].mxu0
        %v1966 = vadd.f32 0.0, %v1965
        %v1967 = vpop.f32.mrb[0].mxu0
        %v1968 = vpop.f32.mrb[0].mxu0
        %v1969 = vpop.f32.mrb[0].mxu0
        %1970 = vdwg.mxu0
        %v1971 = vadd.f32 %v1890, %v1966
        %v1972 = vmul.f32 %v1971, %v1739
        %v1973 = vadd.f32 %v1972, %v1740
        %v1974 = vmax.f32 %v1973, 0.0
        %1975 = vmatprep.subr.bf16.mxu0 0
        %1976 = vmatpush1.bf16.msra.mxu0 %v1776
        %1977 = vmatprep.subr.bf16.mxu0 0
        %1978 = vmatpush1.bf16.msra.mxu0 %v1777
        %1979 = vmatprep.subr.bf16.mxu0 0
        %1980 = vmatpush1.bf16.msra.mxu0 %v1778
        %1981 = vmatprep.subr.bf16.mxu0 0
        %1982 = vmatpush1.bf16.msra.mxu0 %v1779
        %1983 = vmatprep.subr.bf16.mxu0 0
        %1984 = vmatpush1.bf16.msra.mxu0 0
        %1985 = vmatprep.subr.bf16.mxu0 0
        %1986 = vmatpush1.bf16.msra.mxu0 0
        %1987 = vmatprep.subr.bf16.mxu0 0
        %1988 = vmatpush1.bf16.msra.mxu0 0
        %1989 = vmatprep.subr.bf16.mxu0 0
        %1990 = vmatpush1.bf16.msra.mxu0 0
        %1991 = vmatprep.subr.bf16.mxu0 0
        %1992 = vmatpush1.bf16.msra.mxu0 0
        %1993 = vmatprep.subr.bf16.mxu0 0
        %1994 = vmatpush1.bf16.msra.mxu0 0
        %1995 = vmatprep.subr.bf16.mxu0 0
        %1996 = vmatpush1.bf16.msra.mxu0 0
        %1997 = vmatprep.subr.bf16.mxu0 0
        %1998 = vmatpush1.bf16.msra.mxu0 0
        %1999 = vmatprep.subr.bf16.mxu0 0
        %2000 = vmatpush1.bf16.msra.mxu0 0
        %2001 = vmatprep.subr.bf16.mxu0 0
        %2002 = vmatpush1.bf16.msra.mxu0 0
        %2003 = vmatprep.subr.bf16.mxu0 0
        %2004 = vmatpush1.bf16.msra.mxu0 0
        %2005 = vmatprep.subr.bf16.mxu0 0
        %2006 = vmatpush1.bf16.msra.mxu0 0
        %2007 = vmatprep.mubr.bf16.mxu0 0
        %2008 = vmatmul.mubr.bf16.gmra.mrb[0].mxu0 %v1929
        %v2009 = vpop.f32.mrb[0].mxu0
        %v2010 = vadd.f32 0.0, %v2009
        %v2011 = vpop.f32.mrb[0].mxu0
        %v2012 = vpop.f32.mrb[0].mxu0
        %v2013 = vpop.f32.mrb[0].mxu0
        %2014 = vdwg.mxu0
        %2015 = vmatprep.subr.bf16.mxu0 0
        %2016 = vmatpush1.bf16.msra.mxu0 %v1844
        %2017 = vmatprep.subr.bf16.mxu0 0
        %2018 = vmatpush1.bf16.msra.mxu0 %v1845
        %2019 = vmatprep.subr.bf16.mxu0 0
        %2020 = vmatpush1.bf16.msra.mxu0 %v1846
        %2021 = vmatprep.subr.bf16.mxu0 0
        %2022 = vmatpush1.bf16.msra.mxu0 %v1847
        %2023 = vmatprep.subr.bf16.mxu0 0
        %2024 = vmatpush1.bf16.msra.mxu0 0
        %2025 = vmatprep.subr.bf16.mxu0 0
        %2026 = vmatpush1.bf16.msra.mxu0 0
        %2027 = vmatprep.subr.bf16.mxu0 0
        %2028 = vmatpush1.bf16.msra.mxu0 0
        %2029 = vmatprep.subr.bf16.mxu0 0
        %2030 = vmatpush1.bf16.msra.mxu0 0
        %2031 = vmatprep.subr.bf16.mxu0 0
        %2032 = vmatpush1.bf16.msra.mxu0 0
        %2033 = vmatprep.subr.bf16.mxu0 0
        %2034 = vmatpush1.bf16.msra.mxu0 0
        %2035 = vmatprep.subr.bf16.mxu0 0
        %2036 = vmatpush1.bf16.msra.mxu0 0
        %2037 = vmatprep.subr.bf16.mxu0 0
        %2038 = vmatpush1.bf16.msra.mxu0 0
        %2039 = vmatprep.subr.bf16.mxu0 0
        %2040 = vmatpush1.bf16.msra.mxu0 0
        %2041 = vmatprep.subr.bf16.mxu0 0
        %2042 = vmatpush1.bf16.msra.mxu0 0
        %2043 = vmatprep.subr.bf16.mxu0 0
        %2044 = vmatpush1.bf16.msra.mxu0 0
        %2045 = vmatprep.subr.bf16.mxu0 0
        %2046 = vmatpush1.bf16.msra.mxu0 0
        %2047 = vmatprep.mubr.bf16.mxu0 0
        %2048 = vmatmul.mubr.bf16.gmra.mrb[0].mxu0 %v1786
        %v2049 = vpop.f32.mrb[0].mxu0
        %v2050 = vadd.f32 %v2010, %v2049
        %v2051 = vpop.f32.mrb[0].mxu0
        %v2052 = vpop.f32.mrb[0].mxu0
        %v2053 = vpop.f32.mrb[0].mxu0
        %2054 = vdwg.mxu0
        %v2055 = vrot.slane %v1741, 3
        %v2057 = vsel %vm1784, %v2055, 0
        %2059 = vmatprep.subr.bf16.mxu0 0
        %2060 = vmatpush1.bf16.msra.mxu0 %v1920
        %2061 = vmatprep.subr.bf16.mxu0 0
        %2062 = vmatpush1.bf16.msra.mxu0 %v1921
        %2063 = vmatprep.subr.bf16.mxu0 0
        %2064 = vmatpush1.bf16.msra.mxu0 %v1922
        %2065 = vmatprep.subr.bf16.mxu0 0
        %2066 = vmatpush1.bf16.msra.mxu0 %v1923
        %2067 = vmatprep.subr.bf16.mxu0 0
        %2068 = vmatpush1.bf16.msra.mxu0 0
        %2069 = vmatprep.subr.bf16.mxu0 0
        %2070 = vmatpush1.bf16.msra.mxu0 0
        %2071 = vmatprep.subr.bf16.mxu0 0
        %2072 = vmatpush1.bf16.msra.mxu0 0
        %2073 = vmatprep.subr.bf16.mxu0 0
        %2074 = vmatpush1.bf16.msra.mxu0 0
        %2075 = vmatprep.subr.bf16.mxu0 0
        %2076 = vmatpush1.bf16.msra.mxu0 0
        %2077 = vmatprep.subr.bf16.mxu0 0
        %2078 = vmatpush1.bf16.msra.mxu0 0
        %2079 = vmatprep.subr.bf16.mxu0 0
        %2080 = vmatpush1.bf16.msra.mxu0 0
        %2081 = vmatprep.subr.bf16.mxu0 0
        %2082 = vmatpush1.bf16.msra.mxu0 0
        %2083 = vmatprep.subr.bf16.mxu0 0
        %2084 = vmatpush1.bf16.msra.mxu0 0
        %2085 = vmatprep.subr.bf16.mxu0 0
        %2086 = vmatpush1.bf16.msra.mxu0 0
        %2087 = vmatprep.subr.bf16.mxu0 0
        %2088 = vmatpush1.bf16.msra.mxu0 0
        %2089 = vmatprep.subr.bf16.mxu0 0
        %2090 = vmatpush1.bf16.msra.mxu0 0
        %2091 = vmatprep.mubr.bf16.mxu0 0
        %2092 = vmatmul.mubr.bf16.gmra.mrb[0].mxu0 %v2057
        %v2093 = vpop.f32.mrb[0].mxu0
        %v2094 = vadd.f32 0.0, %v2093
        %v2095 = vpop.f32.mrb[0].mxu0
        %v2096 = vpop.f32.mrb[0].mxu0
        %v2097 = vpop.f32.mrb[0].mxu0
        %2098 = vdwg.mxu0
        %v2099 = vadd.f32 %v2050, %v2094
        %v2100 = vmul.f32 %v2099, %v1739
        %v2101 = vadd.f32 %v2100, %v1740
        %v2102 = vmax.f32 %v2101, 0.0
        %2103 = vmatprep.subr.bf16.mxu0 0
        %2104 = vmatpush1.bf16.msra.mxu0 %v1776
        %2105 = vmatprep.subr.bf16.mxu0 0
        %2106 = vmatpush1.bf16.msra.mxu0 %v1777
        %2107 = vmatprep.subr.bf16.mxu0 0
        %2108 = vmatpush1.bf16.msra.mxu0 %v1778
        %2109 = vmatprep.subr.bf16.mxu0 0
        %2110 = vmatpush1.bf16.msra.mxu0 %v1779
        %2111 = vmatprep.subr.bf16.mxu0 0
        %2112 = vmatpush1.bf16.msra.mxu0 0
        %2113 = vmatprep.subr.bf16.mxu0 0
        %2114 = vmatpush1.bf16.msra.mxu0 0
        %2115 = vmatprep.subr.bf16.mxu0 0
        %2116 = vmatpush1.bf16.msra.mxu0 0
        %2117 = vmatprep.subr.bf16.mxu0 0
        %2118 = vmatpush1.bf16.msra.mxu0 0
        %2119 = vmatprep.subr.bf16.mxu0 0
        %2120 = vmatpush1.bf16.msra.mxu0 0
        %2121 = vmatprep.subr.bf16.mxu0 0
        %2122 = vmatpush1.bf16.msra.mxu0 0
        %2123 = vmatprep.subr.bf16.mxu0 0
        %2124 = vmatpush1.bf16.msra.mxu0 0
        %2125 = vmatprep.subr.bf16.mxu0 0
        %2126 = vmatpush1.bf16.msra.mxu0 0
        %2127 = vmatprep.subr.bf16.mxu0 0
        %2128 = vmatpush1.bf16.msra.mxu0 0
        %2129 = vmatprep.subr.bf16.mxu0 0
        %2130 = vmatpush1.bf16.msra.mxu0 0
        %2131 = vmatprep.subr.bf16.mxu0 0
        %2132 = vmatpush1.bf16.msra.mxu0 0
        %2133 = vmatprep.subr.bf16.mxu0 0
        %2134 = vmatpush1.bf16.msra.mxu0 0
        %2135 = vmatprep.mubr.bf16.mxu0 0
        %2136 = vmatmul.mubr.bf16.gmra.mrb[0].mxu0 %v2057
        %v2137 = vpop.f32.mrb[0].mxu0
        %v2138 = vadd.f32 0.0, %v2137
        %v2139 = vpop.f32.mrb[0].mxu0
        %v2140 = vpop.f32.mrb[0].mxu0
        %v2141 = vpop.f32.mrb[0].mxu0
        %2142 = vdwg.mxu0
        %2143 = vmatprep.subr.bf16.mxu0 0
        %2144 = vmatpush1.bf16.msra.mxu0 %v1844
        %2145 = vmatprep.subr.bf16.mxu0 0
        %2146 = vmatpush1.bf16.msra.mxu0 %v1845
        %2147 = vmatprep.subr.bf16.mxu0 0
        %2148 = vmatpush1.bf16.msra.mxu0 %v1846
        %2149 = vmatprep.subr.bf16.mxu0 0
        %2150 = vmatpush1.bf16.msra.mxu0 %v1847
        %2151 = vmatprep.subr.bf16.mxu0 0
        %2152 = vmatpush1.bf16.msra.mxu0 0
        %2153 = vmatprep.subr.bf16.mxu0 0
        %2154 = vmatpush1.bf16.msra.mxu0 0
        %2155 = vmatprep.subr.bf16.mxu0 0
        %2156 = vmatpush1.bf16.msra.mxu0 0
        %2157 = vmatprep.subr.bf16.mxu0 0
        %2158 = vmatpush1.bf16.msra.mxu0 0
        %2159 = vmatprep.subr.bf16.mxu0 0
        %2160 = vmatpush1.bf16.msra.mxu0 0
        %2161 = vmatprep.subr.bf16.mxu0 0
        %2162 = vmatpush1.bf16.msra.mxu0 0
        %2163 = vmatprep.subr.bf16.mxu0 0
        %2164 = vmatpush1.bf16.msra.mxu0 0
        %2165 = vmatprep.subr.bf16.mxu0 0
        %2166 = vmatpush1.bf16.msra.mxu0 0
        %2167 = vmatprep.subr.bf16.mxu0 0
        %2168 = vmatpush1.bf16.msra.mxu0 0
        %2169 = vmatprep.subr.bf16.mxu0 0
        %2170 = vmatpush1.bf16.msra.mxu0 0
        %2171 = vmatprep.subr.bf16.mxu0 0
        %2172 = vmatpush1.bf16.msra.mxu0 0
        %2173 = vmatprep.subr.bf16.mxu0 0
        %2174 = vmatpush1.bf16.msra.mxu0 0
        %2175 = vmatprep.mubr.bf16.mxu0 0
        %2176 = vmatmul.mubr.bf16.gmra.mrb[0].mxu0 %v1929
        %v2177 = vpop.f32.mrb[0].mxu0
        %v2178 = vadd.f32 %v2138, %v2177
        %v2179 = vpop.f32.mrb[0].mxu0
        %v2180 = vpop.f32.mrb[0].mxu0
        %v2181 = vpop.f32.mrb[0].mxu0
        %2182 = vdwg.mxu0
        %v2183 = vpack.c.bf16 %v1738, %v1738
        %v2185 = vsel %vm1784, %v2183, 0
        %2187 = vmatprep.subr.bf16.mxu0 0
        %2188 = vmatpush1.bf16.msra.mxu0 %v1920
        %2189 = vmatprep.subr.bf16.mxu0 0
        %2190 = vmatpush1.bf16.msra.mxu0 %v1921
        %2191 = vmatprep.subr.bf16.mxu0 0
        %2192 = vmatpush1.bf16.msra.mxu0 %v1922
        %2193 = vmatprep.subr.bf16.mxu0 0
        %2194 = vmatpush1.bf16.msra.mxu0 %v1923
        %2195 = vmatprep.subr.bf16.mxu0 0
        %2196 = vmatpush1.bf16.msra.mxu0 0
        %2197 = vmatprep.subr.bf16.mxu0 0
        %2198 = vmatpush1.bf16.msra.mxu0 0
        %2199 = vmatprep.subr.bf16.mxu0 0
        %2200 = vmatpush1.bf16.msra.mxu0 0
        %2201 = vmatprep.subr.bf16.mxu0 0
        %2202 = vmatpush1.bf16.msra.mxu0 0
        %2203 = vmatprep.subr.bf16.mxu0 0
        %2204 = vmatpush1.bf16.msra.mxu0 0
        %2205 = vmatprep.subr.bf16.mxu0 0
        %2206 = vmatpush1.bf16.msra.mxu0 0
        %2207 = vmatprep.subr.bf16.mxu0 0
        %2208 = vmatpush1.bf16.msra.mxu0 0
        %2209 = vmatprep.subr.bf16.mxu0 0
        %2210 = vmatpush1.bf16.msra.mxu0 0
        %2211 = vmatprep.subr.bf16.mxu0 0
        %2212 = vmatpush1.bf16.msra.mxu0 0
        %2213 = vmatprep.subr.bf16.mxu0 0
        %2214 = vmatpush1.bf16.msra.mxu0 0
        %2215 = vmatprep.subr.bf16.mxu0 0
        %2216 = vmatpush1.bf16.msra.mxu0 0
        %2217 = vmatprep.subr.bf16.mxu0 0
        %2218 = vmatpush1.bf16.msra.mxu0 0
        %2219 = vmatprep.mubr.bf16.mxu0 0
        %2220 = vmatmul.mubr.bf16.gmra.mrb[0].mxu0 %v2185
        %v2221 = vpop.f32.mrb[0].mxu0
        %v2222 = vadd.f32 0.0, %v2221
        %v2223 = vpop.f32.mrb[0].mxu0
        %v2224 = vpop.f32.mrb[0].mxu0
        %v2225 = vpop.f32.mrb[0].mxu0
        %2226 = vdwg.mxu0
        %v2227 = vadd.f32 %v2178, %v2222
        %v2228 = vmul.f32 %v2227, %v1739
        %v2229 = vadd.f32 %v2228, %v1740
        %v2230 = vmax.f32 %v2229, 0.0
        %v2231 = vld [vmem:[%s14] sm:$0x1]
        %v2232 = vld [vmem:[%s15] sm:$0x1]
        %v2233 = vpack.c.bf16 %v1974, %v1974
        %v2234 = vld [vmem:[%s13] sm:$0xf]
        %v2235 = vld [vmem:[%s13 + $0x4] sm:$0xf]
        %v2236 = vld [vmem:[%s13 + $0x8] sm:$0xf]
        %v2237 = vld [vmem:[%s13 + $0xc] sm:$0xf]
        %v2238 = vld [vmem:[%s13 + $0x10] sm:$0xf]
        %v2239 = vld [vmem:[%s13 + $0x14] sm:$0xf]
        %v2240 = vld [vmem:[%s13 + $0x18] sm:$0xf]
        %v2241 = vld [vmem:[%s13 + $0x1c] sm:$0xf]
        %v2242 = vld [vmem:[%s13 + $0x20] sm:$0xf]
        %v2243 = vld [vmem:[%s13 + $0x24] sm:$0xf]
        %v2244 = vld [vmem:[%s13 + $0x28] sm:$0xf]
        %v2245 = vld [vmem:[%s13 + $0x2c] sm:$0xf]
        %v2246 = vld [vmem:[%s13 + $0x30] sm:$0xf]
        %v2247 = vld [vmem:[%s13 + $0x34] sm:$0xf]
        %v2248 = vld [vmem:[%s13 + $0x38] sm:$0xf]
        %v2249 = vld [vmem:[%s13 + $0x3c] sm:$0xf]
        %v2250 = vpack.c.bf16 %v2102, %v2102
        %v2251 = vld [vmem:[%s13 + $0x40] sm:$0xf]
        %v2252 = vld [vmem:[%s13 + $0x44] sm:$0xf]
        %v2253 = vld [vmem:[%s13 + $0x48] sm:$0xf]
        %v2254 = vld [vmem:[%s13 + $0x4c] sm:$0xf]
        %v2255 = vld [vmem:[%s13 + $0x50] sm:$0xf]
        %v2256 = vld [vmem:[%s13 + $0x54] sm:$0xf]
        %v2257 = vld [vmem:[%s13 + $0x58] sm:$0xf]
        %v2258 = vld [vmem:[%s13 + $0x5c] sm:$0xf]
        %v2259 = vld [vmem:[%s13 + $0x60] sm:$0xf]
        %v2260 = vld [vmem:[%s13 + $0x64] sm:$0xf]
        %v2261 = vld [vmem:[%s13 + $0x68] sm:$0xf]
        %v2262 = vld [vmem:[%s13 + $0x6c] sm:$0xf]
        %v2263 = vld [vmem:[%s13 + $0x70] sm:$0xf]
        %v2264 = vld [vmem:[%s13 + $0x74] sm:$0xf]
        %v2265 = vld [vmem:[%s13 + $0x78] sm:$0xf]
        %v2266 = vld [vmem:[%s13 + $0x7c] sm:$0xf]
        %v2283 = vunpack.c.l.b16 %v2251
        %v2284 = vunpack.c.l.b16 %v2252
        %v2285 = vunpack.c.l.b16 %v2253
        %v2286 = vunpack.c.l.b16 %v2254
        %v2287 = vunpack.c.l.b16 %v2255
        %v2288 = vunpack.c.l.b16 %v2256
        %v2289 = vunpack.c.l.b16 %v2257
        %v2290 = vunpack.c.l.b16 %v2258
        %v2291 = vunpack.c.l.b16 %v2259
        %v2292 = vunpack.c.l.b16 %v2260
        %v2293 = vunpack.c.l.b16 %v2261
        %v2294 = vunpack.c.l.b16 %v2262
        %v2295 = vunpack.c.l.b16 %v2263
        %v2296 = vunpack.c.l.b16 %v2264
        %v2297 = vunpack.c.l.b16 %v2265
        %v2298 = vunpack.c.l.b16 %v2266
        %v2299 = vpack.c.b16 %v2284, %v2283
        %v2300 = vpack.c.b16 %v2286, %v2285
        %v2301 = vpack.c.b16 %v2288, %v2287
        %v2302 = vpack.c.b16 %v2290, %v2289
        %v2303 = vpack.c.b16 %v2292, %v2291
        %v2304 = vpack.c.b16 %v2294, %v2293
        %v2305 = vpack.c.b16 %v2296, %v2295
        %v2306 = vpack.c.b16 %v2298, %v2297
        %2315 = vmatprep.subr.bf16.mxu0 0
        %2316 = vmatpush1.bf16.msra.mxu0 %v2299
        %2317 = vmatprep.subr.bf16.mxu0 0
        %2318 = vmatpush1.bf16.msra.mxu0 %v2300
        %2319 = vmatprep.subr.bf16.mxu0 0
        %2320 = vmatpush1.bf16.msra.mxu0 %v2301
        %2321 = vmatprep.subr.bf16.mxu0 0
        %2322 = vmatpush1.bf16.msra.mxu0 %v2302
        %2323 = vmatprep.subr.bf16.mxu0 0
        %2324 = vmatpush1.bf16.msra.mxu0 %v2303
        %2325 = vmatprep.subr.bf16.mxu0 0
        %2326 = vmatpush1.bf16.msra.mxu0 %v2304
        %2327 = vmatprep.subr.bf16.mxu0 0
        %2328 = vmatpush1.bf16.msra.mxu0 %v2305
        %2329 = vmatprep.subr.bf16.mxu0 0
        %2330 = vmatpush1.bf16.msra.mxu0 %v2306
        %2331 = vmatprep.subr.bf16.mxu0 0
        %2332 = vmatpush1.bf16.msra.mxu0 0
        %2333 = vmatprep.subr.bf16.mxu0 0
        %2334 = vmatpush1.bf16.msra.mxu0 0
        %2335 = vmatprep.subr.bf16.mxu0 0
        %2336 = vmatpush1.bf16.msra.mxu0 0
        %2337 = vmatprep.subr.bf16.mxu0 0
        %2338 = vmatpush1.bf16.msra.mxu0 0
        %2339 = vmatprep.subr.bf16.mxu0 0
        %2340 = vmatpush1.bf16.msra.mxu0 0
        %2341 = vmatprep.subr.bf16.mxu0 0
        %2342 = vmatpush1.bf16.msra.mxu0 0
        %2343 = vmatprep.subr.bf16.mxu0 0
        %2344 = vmatpush1.bf16.msra.mxu0 0
        %2345 = vmatprep.subr.bf16.mxu0 0
        %2346 = vmatpush1.bf16.msra.mxu0 0
        %2347 = vmatprep.mubr.bf16.mxu0 0
        %2348 = vmatmul.mubr.bf16.gmra.mrb[0].mxu0 %v2250
        %v2349 = vpop.f32.mrb[0].mxu0
        %v2350 = vadd.f32 0.0, %v2349
        %v2351 = vpop.f32.mrb[0].mxu0
        %v2352 = vpop.f32.mrb[0].mxu0
        %v2353 = vpop.f32.mrb[0].mxu0
        %2354 = vdwg.mxu0
        %v2371 = vunpack.c.l.b16 %v2234
        %v2372 = vunpack.c.l.b16 %v2235
        %v2373 = vunpack.c.l.b16 %v2236
        %v2374 = vunpack.c.l.b16 %v2237
        %v2375 = vunpack.c.l.b16 %v2238
        %v2376 = vunpack.c.l.b16 %v2239
        %v2377 = vunpack.c.l.b16 %v2240
        %v2378 = vunpack.c.l.b16 %v2241
        %v2379 = vunpack.c.l.b16 %v2242
        %v2380 = vunpack.c.l.b16 %v2243
        %v2381 = vunpack.c.l.b16 %v2244
        %v2382 = vunpack.c.l.b16 %v2245
        %v2383 = vunpack.c.l.b16 %v2246
        %v2384 = vunpack.c.l.b16 %v2247
        %v2385 = vunpack.c.l.b16 %v2248
        %v2386 = vunpack.c.l.b16 %v2249
        %v2387 = vpack.c.b16 %v2372, %v2371
        %v2388 = vpack.c.b16 %v2374, %v2373
        %v2389 = vpack.c.b16 %v2376, %v2375
        %v2390 = vpack.c.b16 %v2378, %v2377
        %v2391 = vpack.c.b16 %v2380, %v2379
        %v2392 = vpack.c.b16 %v2382, %v2381
        %v2393 = vpack.c.b16 %v2384, %v2383
        %v2394 = vpack.c.b16 %v2386, %v2385
        %2403 = vmatprep.subr.bf16.mxu0 0
        %2404 = vmatpush1.bf16.msra.mxu0 %v2387
        %2405 = vmatprep.subr.bf16.mxu0 0
        %2406 = vmatpush1.bf16.msra.mxu0 %v2388
        %2407 = vmatprep.subr.bf16.mxu0 0
        %2408 = vmatpush1.bf16.msra.mxu0 %v2389
        %2409 = vmatprep.subr.bf16.mxu0 0
        %2410 = vmatpush1.bf16.msra.mxu0 %v2390
        %2411 = vmatprep.subr.bf16.mxu0 0
        %2412 = vmatpush1.bf16.msra.mxu0 %v2391
        %2413 = vmatprep.subr.bf16.mxu0 0
        %2414 = vmatpush1.bf16.msra.mxu0 %v2392
        %2415 = vmatprep.subr.bf16.mxu0 0
        %2416 = vmatpush1.bf16.msra.mxu0 %v2393
        %2417 = vmatprep.subr.bf16.mxu0 0
        %2418 = vmatpush1.bf16.msra.mxu0 %v2394
        %2419 = vmatprep.subr.bf16.mxu0 0
        %2420 = vmatpush1.bf16.msra.mxu0 0
        %2421 = vmatprep.subr.bf16.mxu0 0
        %2422 = vmatpush1.bf16.msra.mxu0 0
        %2423 = vmatprep.subr.bf16.mxu0 0
        %2424 = vmatpush1.bf16.msra.mxu0 0
        %2425 = vmatprep.subr.bf16.mxu0 0
        %2426 = vmatpush1.bf16.msra.mxu0 0
        %2427 = vmatprep.subr.bf16.mxu0 0
        %2428 = vmatpush1.bf16.msra.mxu0 0
        %2429 = vmatprep.subr.bf16.mxu0 0
        %2430 = vmatpush1.bf16.msra.mxu0 0
        %2431 = vmatprep.subr.bf16.mxu0 0
        %2432 = vmatpush1.bf16.msra.mxu0 0
        %2433 = vmatprep.subr.bf16.mxu0 0
        %2434 = vmatpush1.bf16.msra.mxu0 0
        %2435 = vmatprep.mubr.bf16.mxu0 0
        %2436 = vmatmul.mubr.bf16.gmra.mrb[0].mxu0 %v2233
        %v2437 = vpop.f32.mrb[0].mxu0
        %v2438 = vadd.f32 %v2350, %v2437
        %v2439 = vpop.f32.mrb[0].mxu0
        %v2440 = vpop.f32.mrb[0].mxu0
        %v2441 = vpop.f32.mrb[0].mxu0
        %2442 = vdwg.mxu0
        %v2443 = vpack.c.bf16 %v2230, %v2230
        %v2444 = vld [vmem:[%s13 + $0x80] sm:$0xf]
        %v2445 = vld [vmem:[%s13 + $0x84] sm:$0xf]
        %v2446 = vld [vmem:[%s13 + $0x88] sm:$0xf]
        %v2447 = vld [vmem:[%s13 + $0x8c] sm:$0xf]
        %v2448 = vld [vmem:[%s13 + $0x90] sm:$0xf]
        %v2449 = vld [vmem:[%s13 + $0x94] sm:$0xf]
        %v2450 = vld [vmem:[%s13 + $0x98] sm:$0xf]
        %v2451 = vld [vmem:[%s13 + $0x9c] sm:$0xf]
        %v2452 = vld [vmem:[%s13 + $0xa0] sm:$0xf]
        %v2453 = vld [vmem:[%s13 + $0xa4] sm:$0xf]
        %v2454 = vld [vmem:[%s13 + $0xa8] sm:$0xf]
        %v2455 = vld [vmem:[%s13 + $0xac] sm:$0xf]
        %v2456 = vld [vmem:[%s13 + $0xb0] sm:$0xf]
        %v2457 = vld [vmem:[%s13 + $0xb4] sm:$0xf]
        %v2458 = vld [vmem:[%s13 + $0xb8] sm:$0xf]
        %v2459 = vld [vmem:[%s13 + $0xbc] sm:$0xf]
        %v2476 = vunpack.c.l.b16 %v2444
        %v2477 = vunpack.c.l.b16 %v2445
        %v2478 = vunpack.c.l.b16 %v2446
        %v2479 = vunpack.c.l.b16 %v2447
        %v2480 = vunpack.c.l.b16 %v2448
        %v2481 = vunpack.c.l.b16 %v2449
        %v2482 = vunpack.c.l.b16 %v2450
        %v2483 = vunpack.c.l.b16 %v2451
        %v2484 = vunpack.c.l.b16 %v2452
        %v2485 = vunpack.c.l.b16 %v2453
        %v2486 = vunpack.c.l.b16 %v2454
        %v2487 = vunpack.c.l.b16 %v2455
        %v2488 = vunpack.c.l.b16 %v2456
        %v2489 = vunpack.c.l.b16 %v2457
        %v2490 = vunpack.c.l.b16 %v2458
        %v2491 = vunpack.c.l.b16 %v2459
        %v2492 = vpack.c.b16 %v2477, %v2476
        %v2493 = vpack.c.b16 %v2479, %v2478
        %v2494 = vpack.c.b16 %v2481, %v2480
        %v2495 = vpack.c.b16 %v2483, %v2482
        %v2496 = vpack.c.b16 %v2485, %v2484
        %v2497 = vpack.c.b16 %v2487, %v2486
        %v2498 = vpack.c.b16 %v2489, %v2488
        %v2499 = vpack.c.b16 %v2491, %v2490
        %2508 = vmatprep.subr.bf16.mxu0 0
        %2509 = vmatpush1.bf16.msra.mxu0 %v2492
        %2510 = vmatprep.subr.bf16.mxu0 0
        %2511 = vmatpush1.bf16.msra.mxu0 %v2493
        %2512 = vmatprep.subr.bf16.mxu0 0
        %2513 = vmatpush1.bf16.msra.mxu0 %v2494
        %2514 = vmatprep.subr.bf16.mxu0 0
        %2515 = vmatpush1.bf16.msra.mxu0 %v2495
        %2516 = vmatprep.subr.bf16.mxu0 0
        %2517 = vmatpush1.bf16.msra.mxu0 %v2496
        %2518 = vmatprep.subr.bf16.mxu0 0
        %2519 = vmatpush1.bf16.msra.mxu0 %v2497
        %2520 = vmatprep.subr.bf16.mxu0 0
        %2521 = vmatpush1.bf16.msra.mxu0 %v2498
        %2522 = vmatprep.subr.bf16.mxu0 0
        %2523 = vmatpush1.bf16.msra.mxu0 %v2499
        %2524 = vmatprep.subr.bf16.mxu0 0
        %2525 = vmatpush1.bf16.msra.mxu0 0
        %2526 = vmatprep.subr.bf16.mxu0 0
        %2527 = vmatpush1.bf16.msra.mxu0 0
        %2528 = vmatprep.subr.bf16.mxu0 0
        %2529 = vmatpush1.bf16.msra.mxu0 0
        %2530 = vmatprep.subr.bf16.mxu0 0
        %2531 = vmatpush1.bf16.msra.mxu0 0
        %2532 = vmatprep.subr.bf16.mxu0 0
        %2533 = vmatpush1.bf16.msra.mxu0 0
        %2534 = vmatprep.subr.bf16.mxu0 0
        %2535 = vmatpush1.bf16.msra.mxu0 0
        %2536 = vmatprep.subr.bf16.mxu0 0
        %2537 = vmatpush1.bf16.msra.mxu0 0
        %2538 = vmatprep.subr.bf16.mxu0 0
        %2539 = vmatpush1.bf16.msra.mxu0 0
        %2540 = vmatprep.mubr.bf16.mxu0 0
        %2541 = vmatmul.mubr.bf16.gmra.mrb[0].mxu0 %v2443
        %v2542 = vpop.f32.mrb[0].mxu0
        %v2543 = vadd.f32 0.0, %v2542
        %v2544 = vpop.f32.mrb[0].mxu0
        %v2545 = vpop.f32.mrb[0].mxu0
        %v2546 = vpop.f32.mrb[0].mxu0
        %2547 = vdwg.mxu0
        %v2548 = vadd.f32 %v2438, %v2543
        %v2549 = vmul.f32 %v2548, %v2231
        %v2550 = vadd.f32 %v2549, %v2232
        %v2551 = vmax.f32 %v2550, 0.0
        %vm2552 = vcmask 57344
        %2553 = vst.msk [vmem:[%s513] sm:$0x1] %vm2552, %v2551
        %s2554 = sand.u32 %s379, 1
        %s2555 = scalar_lea.sflag [#allocation3], %s2554
        %s2556 = sand.u32 %s379, 1
        %s2557 = scalar_lea.vmem [#allocation2], %s2556
        // Predicated region
        $region85: #{_lambda_.1} parent=83 // pred_check
          %p2558 = pneg %p389
        $region86: #{_lambda_.1} parent=83 // pred_check_branch
          %2560 = sbr.rel (%p2558) target = $region88
        $region87: #{_lambda_.1} parent=83 // pred_region
          %s2562 = ssub.s32 16, 16
          %2563 = vsyncadd %s2555, %s2562
          %s2564 = smul.addr %s30, 16
          %s2565 = scalar_lea.hbm %s16, %s2564
          %s2567 = sshll.u32 %s2557, 4
          %s2568 = int_to_ptr.vmem [resolvable:$true] %s2567
          %2570 = dma.vmem_to_hbm [thread:$0]  %s2568, 16, %s2565, %s2555
        $region88: #{_lambda_.1} parent=83 // pred_fallthru
          _
      $region84: #{_lambda_.1} parent=5 // pred_fallthru
        _
      %p2571 = scmp.le.s32.totalorder 2, %s25
      // Predicated region
      $region89: #{_lambda_.1} parent=5 // pred_check
        %p2572 = pneg %p2571
      $region90: #{_lambda_.1} parent=5 // pred_check_branch
        %2574 = sbr.rel (%p2572) target = $region92
      $region91: #{_lambda_.1} parent=5 // pred_region
        %s2575 = ssub.s32 %s25, 2
        // Predicated region
        $region93: #{_lambda_.1} parent=91 // pred_check
          %p2576 = pneg %p395
        $region94: #{_lambda_.1} parent=91 // pred_check_branch
          %2578 = sbr.rel (%p2576) target = $region96
        $region95: #{_lambda_.1} parent=91 // pred_region
          %s2579 = sand.u32 %s380, 1
          %s2580 = scalar_lea.sflag [#allocation3], %s2579
          %s2581 = sand.u32 %s380, 1
          %s2582 = scalar_lea.vmem [#allocation2], %s2581
          %2583 = dma.done %s2580, 16
        $region96: #{_lambda_.1} parent=91 // pred_fallthru
          _
      $region92: #{_lambda_.1} parent=5 // pred_fallthru
        _
    $region6: #{_lambda_.1} parent=1 // loop_footer
      %s29 = sadd.s32 1, %s25
    $region7: #{_lambda_.1} parent=1 // loop_footer_branch
      %24 = sbr.rel target = $region3
    $region8: #{_lambda_.1} parent=1 // loop_exit
      _
    %2584 = vsyncpa [#allocation3], 1
    %s2585 = scalar_lea.sflag [#allocation3], 1
    %2586 = vsyncpa %s2585, 1

</llo_original>
